<compile_context>
chip_gen: v7x
topology: tpu7x:2x2x1
jax: 0.10.0
libtpu: 0.0.40
codegen_flags: <defaults>
</compile_context>

<pallas_src>
import functools

import jax
import jax.numpy as jnp
import numpy as np
from jax.experimental import pallas as pl
from jax.experimental.pallas import tpu as pltpu

NEG_INF = -1e30         # additive mask for cross-head attention entries
L2_EPS = 1e-12          # torch.nn.functional.normalize default eps

# 3x3 taps in torch weight row-major (ky, kx) order -> (dy, dx) offsets.
_TAPS = [(-1, -1), (-1, 0), (-1, 1),
         (0, -1), (0, 0), (0, 1),
         (1, -1), (1, 0), (1, 1)]


def _dwconv3x3(x, w_ref, b_ref, colmask_ref, H, W):
    """Depthwise 3x3 conv (stride 1, padding 1) on (C, L=H*W), L on lanes.

    x:           (C, L) f32 value
    w_ref:       (C, 9) per-channel taps (row-major ky,kx, torch layout)
    b_ref:       (C, 1) per-channel bias
    colmask_ref: (2, L) float masks for dx = -1 (row 0) and dx = +1 (row 1)

    Vertical (dy) out-of-image reads are fully absorbed by the zero padding;
    only horizontal wrap-around needs the precomputed column masks.
    """
    Cx, L = x.shape
    pad = W + 8                                   # >= |max shift| = W + 1
    zpad = jnp.zeros((Cx, pad), dtype=x.dtype)
    xp = jnp.concatenate([zpad, x, zpad], axis=1)           # (Cx, L + 2*pad)
    acc = jnp.zeros((Cx, L), dtype=jnp.float32)
    for t, (dy, dx) in enumerate(_TAPS):
        s = dy * W + dx
        shifted = jax.lax.slice(xp, (0, pad + s), (Cx, pad + s + L))
        if dx == -1:
            shifted = shifted * colmask_ref[0:1, :]
        elif dx == 1:
            shifted = shifted * colmask_ref[1:2, :]
        acc = acc + shifted * w_ref[:, t:t + 1]
    return acc + b_ref[...]


def _attention_kernel(x_ref, f_ref,
                      wqkv_f_ref, wqkv_x_ref, bqkv_ref,
                      dw_w_ref, dw_b_ref, colmask_ref,
                      temp_ref, hmask_ref, wproj_ref, bproj_ref,
                      o_ref, *, H, W, dim):
    x = x_ref[...]                                # (C, L)
    f = f_ref[...]                                # (C, L)

    # Fused 1x1 convs: qkv0 = [wq;0;0] @ f + [0;wkv] @ x + [bq;bkv]  -> (3C, L)
    qkv0 = (jnp.dot(wqkv_f_ref[...], f, preferred_element_type=jnp.float32)
            + jnp.dot(wqkv_x_ref[...], x, preferred_element_type=jnp.float32)
            + bqkv_ref[...])

    # One fused depthwise 3x3 conv over all 3C channels (q, k, v together).
    qkv = _dwconv3x3(qkv0, dw_w_ref, dw_b_ref, colmask_ref, H, W)
    q = qkv[:dim, :]
    k = qkv[dim:2 * dim, :]
    v = qkv[2 * dim:, :]

    # L2-normalize along spatial axis (F.normalize(dim=-1), eps=1e-12):
    # x / max(||x||, eps) == x * rsqrt(max(||x||^2, eps^2)).
    qn = q * jax.lax.rsqrt(
        jnp.maximum(jnp.sum(q * q, axis=-1, keepdims=True), L2_EPS * L2_EPS))
    kn = k * jax.lax.rsqrt(
        jnp.maximum(jnp.sum(k * k, axis=-1, keepdims=True), L2_EPS * L2_EPS))

    # Channel attention over all heads at once: scores (C, C) contracted over
    # L, cross-head entries killed with an additive block-diagonal mask.
    scores = jax.lax.dot_general(qn, kn, (((1,), (1,)), ((), ())),
                                 preferred_element_type=jnp.float32)      # (C, C)
    logits = scores * temp_ref[...] + hmask_ref[...]
    m = jnp.max(logits, axis=-1, keepdims=True)
    e = jnp.exp(logits - m)
    probs = e / jnp.sum(e, axis=-1, keepdims=True)

    outh = jnp.dot(probs, v, preferred_element_type=jnp.float32)          # (C, L)
    out = jnp.dot(wproj_ref[...], outh,
                  preferred_element_type=jnp.float32) + bproj_ref[...]
    o_ref[...] = out.astype(o_ref.dtype)


def attention_forward(x, f, params, num_heads):
    """x, f: (N, C, H, W).  Returns (N, C, H, W)."""
    N, C, H, W = x.shape
    assert C % num_heads == 0
    hd = C // num_heads
    L = H * W

    # NCHW -> (N, C, L) is a contiguous reshape (no transpose, no HBM shuffle).
    x2 = x.reshape(N, C, L)
    f2 = f.reshape(N, C, L)

    # Stack the q and kv pointwise convs into one (3C, L) producer.
    zC = jnp.zeros((C, C), jnp.float32)
    wqkv_f = jnp.concatenate([params["wq"], zC, zC], axis=0)              # (3C, C)
    wqkv_x = jnp.concatenate([zC, params["wkv"]], axis=0)                 # (3C, C)
    bqkv = jnp.concatenate([params["bq"], params["bkv"]], axis=0)         # (3C, 1)
    dw_w = jnp.concatenate([params["qdw_w"], params["kvdw_w"]], axis=0)   # (3C, 9)
    dw_b = jnp.concatenate([params["qdw_b"], params["kvdw_b"]], axis=0)   # (3C, 1)

    # Per-row temperature (head,1,1) -> (C,1); block-diagonal head mask (C,C).
    temp_col = jnp.repeat(params["temp"].reshape(num_heads, 1), hd, axis=0)
    head_ids = np.arange(C) // hd
    hmask = jnp.asarray(
        np.where(head_ids[:, None] == head_ids[None, :], 0.0, NEG_INF)
        .astype(np.float32))

    # Column-wrap validity masks for the depthwise conv (dx = -1 / +1).
    col = np.arange(L) % W
    colmask = jnp.asarray(
        np.stack([(col > 0), (col < W - 1)]).astype(np.float32))          # (2, L)

    weights = (wqkv_f, wqkv_x, bqkv, dw_w, dw_b, colmask,
               temp_col, hmask, params["wproj"], params["bproj"])

    act_spec = pl.BlockSpec((None, C, L), lambda n: (n, 0, 0))

    def full_spec(a):
        return pl.BlockSpec(a.shape, lambda n, _nd=a.ndim: (0,) * _nd)

    # NOTE: whole image per grid step is fine here (a few hundred KB of VMEM);
    # for large H*W this would need spatial tiling with cross-tile reductions
    # for the L2 norms / attention contraction.
    out = pl.pallas_call(
        functools.partial(_attention_kernel, H=H, W=W, dim=C),
        out_shape=jax.ShapeDtypeStruct((N, C, L), jnp.float32),
        grid=(N,),
        in_specs=[act_spec, act_spec] + [full_spec(a) for a in weights],
        out_specs=act_spec,
        compiler_params=pltpu.CompilerParams(dimension_semantics=("parallel",)),
    )(x2, f2, *weights)
    return out.reshape(N, C, H, W)


# ----------------------------------------------------------------------------
# Pure-JAX reference (independent implementation: XLA conv / einsum) for checks
# ----------------------------------------------------------------------------
_HP = jax.lax.Precision.HIGHEST


def _ref_conv1x1(t, w, b):
    y = jnp.einsum("oc,nchw->nohw", w, t, precision=_HP)
    return y + b.reshape(1, -1, 1, 1)


def _ref_dwconv3x3(t, w, b):
    Cx = t.shape[1]
    kern = w.reshape(Cx, 1, 3, 3)
    y = jax.lax.conv_general_dilated(
        t, kern, window_strides=(1, 1), padding=((1, 1), (1, 1)),
        dimension_numbers=("NCHW", "OIHW", "NCHW"),
        feature_group_count=Cx, precision=_HP)
    return y + b.reshape(1, Cx, 1, 1)


def _ref_l2norm(t):
    n = jnp.sqrt(jnp.sum(t * t, axis=-1, keepdims=True))
    return t / jnp.maximum(n, L2_EPS)


def ref_forward(x, f, params, num_heads):
    N, C, H, W = x.shape
    hd = C // num_heads
    L = H * W
    q = _ref_dwconv3x3(_ref_conv1x1(f, params["wq"], params["bq"]),
                       params["qdw_w"], params["qdw_b"])
    kv = _ref_dwconv3x3(_ref_conv1x1(x, params["wkv"], params["bkv"]),
                        params["kvdw_w"], params["kvdw_b"])
    k, v = kv[:, :C], kv[:, C:]
    q = _ref_l2norm(q.reshape(N, num_heads, hd, L))
    k = _ref_l2norm(k.reshape(N, num_heads, hd, L))
    v = v.reshape(N, num_heads, hd, L)
    attn = jnp.einsum("nhcl,nhdl->nhcd", q, k, precision=_HP) * params["temp"][None]
    attn = jax.nn.softmax(attn, axis=-1)
    out = jnp.einsum("nhcd,nhdl->nhcl", attn, v, precision=_HP)
    out = out.reshape(N, C, H, W)
    return _ref_conv1x1(out, params["wproj"], params["bproj"])


# ----------------------------------------------------------------------------
# Deterministic parameter init (bias=True; 1x1 convs stored as (C_out, C_in),
# depthwise 3x3 weights as (C, 9) row-major over (ky, kx)).
# ----------------------------------------------------------------------------
def init_params(key, dim, num_heads):
    ks = iter(jax.random.split(key, 12))

    def rnd(shape, s=0.1):
        return (s * jax.random.normal(next(ks), shape)).astype(jnp.float32)

    return {
        "wq": rnd((dim, dim)), "bq": rnd((dim, 1)),
        "qdw_w": rnd((dim, 9)), "qdw_b": rnd((dim, 1)),
        "wkv": rnd((2 * dim, dim)), "bkv": rnd((2 * dim, 1)),
        "kvdw_w": rnd((2 * dim, 9)), "kvdw_b": rnd((2 * dim, 1)),
        "wproj": rnd((dim, dim)), "bproj": rnd((dim, 1)),
        # torch init is ones(num_heads,1,1); perturbed here so scaling is exercised.
        "temp": (1.0 + rnd((num_heads, 1, 1))).astype(jnp.float32),
    }


if __name__ == "__main__":
    N, C, H, W = 2, 16, 16, 16
    NUM_HEADS = 4

    key = jax.random.PRNGKey(0)
    kx, kf, kp = jax.random.split(key, 3)
    x = jax.random.normal(kx, (N, C, H, W), dtype=jnp.float32)
    f = jax.random.normal(kf, (N, C, H, W), dtype=jnp.float32)
    params = init_params(kp, C, NUM_HEADS)

    out = jax.block_until_ready(attention_forward(x, f, params, NUM_HEADS))
    ref = jax.block_until_ready(ref_forward(x, f, params, NUM_HEADS))

    np.testing.assert_allclose(np.asarray(out), np.asarray(ref), rtol=5e-3, atol=5e-3)
    assert out.shape == (N, C, H, W) and out.dtype == jnp.float32
    print("KERNEL_OK")
</pallas_src>

<mosaic_0001>
module attributes {stable_mosaic.version = 11 : i64} {
  func.func @_attention_kernel(%arg0: i32, %arg1: memref<1x16x256xf32, #tpu.memory_space<vmem>>, %arg2: memref<1x16x256xf32, #tpu.memory_space<vmem>>, %arg3: memref<48x16xf32, #tpu.memory_space<vmem>>, %arg4: memref<48x16xf32, #tpu.memory_space<vmem>>, %arg5: memref<48x1xf32, #tpu.memory_space<vmem>>, %arg6: memref<48x9xf32, #tpu.memory_space<vmem>>, %arg7: memref<48x1xf32, #tpu.memory_space<vmem>>, %arg8: memref<2x256xf32, #tpu.memory_space<vmem>>, %arg9: memref<16x1xf32, #tpu.memory_space<vmem>>, %arg10: memref<16x16xf32, #tpu.memory_space<vmem>>, %arg11: memref<16x16xf32, #tpu.memory_space<vmem>>, %arg12: memref<16x1xf32, #tpu.memory_space<vmem>>, %arg13: memref<1x16x256xf32, #tpu.memory_space<vmem>>) attributes {dimension_semantics = [#tpu.dimension_semantics<parallel>], iteration_bounds = array<i64: 2>, scalar_prefetch = 0 : i64, scratch_operands = 0 : i64, tpu.core_type = #tpu.core_type<tc>, window_params = [{transform_indices = @transform_0, window_bounds = array<i64: 1, 16, 256>}, {transform_indices = @transform_1, window_bounds = array<i64: 1, 16, 256>}, {pipeline_mode = #tpu.pipeline_mode<synchronous>, transform_indices = @transform_2, window_bounds = array<i64: 48, 16>}, {pipeline_mode = #tpu.pipeline_mode<synchronous>, transform_indices = @transform_3, window_bounds = array<i64: 48, 16>}, {pipeline_mode = #tpu.pipeline_mode<synchronous>, transform_indices = @transform_4, window_bounds = array<i64: 48, 1>}, {pipeline_mode = #tpu.pipeline_mode<synchronous>, transform_indices = @transform_5, window_bounds = array<i64: 48, 9>}, {pipeline_mode = #tpu.pipeline_mode<synchronous>, transform_indices = @transform_6, window_bounds = array<i64: 48, 1>}, {pipeline_mode = #tpu.pipeline_mode<synchronous>, transform_indices = @transform_7, window_bounds = array<i64: 2, 256>}, {pipeline_mode = #tpu.pipeline_mode<synchronous>, transform_indices = @transform_8, window_bounds = array<i64: 16, 1>}, {pipeline_mode = #tpu.pipeline_mode<synchronous>, transform_indices = @transform_9, window_bounds = array<i64: 16, 16>}, {pipeline_mode = #tpu.pipeline_mode<synchronous>, transform_indices = @transform_10, window_bounds = array<i64: 16, 16>}, {pipeline_mode = #tpu.pipeline_mode<synchronous>, transform_indices = @transform_11, window_bounds = array<i64: 16, 1>}, {transform_indices = @transform_12, window_bounds = array<i64: 1, 16, 256>}]} {
    %c0 = arith.constant 0 : index
    %c0_0 = arith.constant 0 : index
    %c0_1 = arith.constant 0 : index
    %0 = vector.load %arg1[%c0, %c0_0, %c0_1] : memref<1x16x256xf32, #tpu.memory_space<vmem>>, vector<1x16x256xf32>
    %1 = vector.shape_cast %0 : vector<1x16x256xf32> to vector<16x256xf32>
    %c0_2 = arith.constant 0 : index
    %c0_3 = arith.constant 0 : index
    %c0_4 = arith.constant 0 : index
    %2 = vector.load %arg2[%c0_2, %c0_3, %c0_4] : memref<1x16x256xf32, #tpu.memory_space<vmem>>, vector<1x16x256xf32>
    %3 = vector.shape_cast %2 : vector<1x16x256xf32> to vector<16x256xf32>
    %c0_5 = arith.constant 0 : index
    %c0_6 = arith.constant 0 : index
    %4 = vector.load %arg3[%c0_5, %c0_6] : memref<48x16xf32, #tpu.memory_space<vmem>>, vector<48x16xf32>
    %cst = arith.constant dense<0.000000e+00> : vector<48x256xf32>
    %5 = tpu.matmul %4, %3, %cst {dimension_numbers = #tpu.dot_dimension_numbers<[1], [0], [0], [1], [0, 0, 1, 1], [], []>} : vector<48x16xf32>, vector<16x256xf32>, vector<48x256xf32> -> vector<48x256xf32>
    %c0_7 = arith.constant 0 : index
    %c0_8 = arith.constant 0 : index
    %6 = vector.load %arg4[%c0_7, %c0_8] : memref<48x16xf32, #tpu.memory_space<vmem>>, vector<48x16xf32>
    %cst_9 = arith.constant dense<0.000000e+00> : vector<48x256xf32>
    %7 = tpu.matmul %6, %1, %cst_9 {dimension_numbers = #tpu.dot_dimension_numbers<[1], [0], [0], [1], [0, 0, 1, 1], [], []>} : vector<48x16xf32>, vector<16x256xf32>, vector<48x256xf32> -> vector<48x256xf32>
    %8 = arith.addf %5, %7 : vector<48x256xf32>
    %c0_10 = arith.constant 0 : index
    %c0_11 = arith.constant 0 : index
    %9 = vector.load %arg5[%c0_10, %c0_11] : memref<48x1xf32, #tpu.memory_space<vmem>>, vector<48x1xf32>
    %10 = vector.broadcast %9 : vector<48x1xf32> to vector<48x256xf32>
    %11 = arith.addf %8, %10 : vector<48x256xf32>
    %cst_12 = arith.constant 0.000000e+00 : f32
    %12 = vector.broadcast %cst_12 : f32 to vector<48x24xf32>
    %13 = tpu.concatenate %12, %11, %12 in 1 : vector<48x24xf32>, vector<48x256xf32>, vector<48x24xf32> -> vector<48x304xf32>
    %cst_13 = arith.constant 0.000000e+00 : f32
    %14 = vector.broadcast %cst_13 : f32 to vector<48x256xf32>
    %15 = vector.extract_strided_slice %13 {offsets = [0, 7], sizes = [48, 256], strides = [1, 1]} : vector<48x304xf32> to vector<48x256xf32>
    %c0_14 = arith.constant 0 : index
    %c0_15 = arith.constant 0 : index
    %16 = vector.load %arg8[%c0_14, %c0_15] : memref<2x256xf32, #tpu.memory_space<vmem>>, vector<1x256xf32>
    %17 = vector.broadcast %16 : vector<1x256xf32> to vector<48x256xf32>
    %18 = arith.mulf %15, %17 : vector<48x256xf32>
    %c0_16 = arith.constant 0 : index
    %c0_17 = arith.constant 0 : index
    %19 = vector.load %arg6[%c0_16, %c0_17] : memref<48x9xf32, #tpu.memory_space<vmem>>, vector<48x1xf32>
    %20 = vector.broadcast %19 : vector<48x1xf32> to vector<48x256xf32>
    %21 = arith.mulf %18, %20 : vector<48x256xf32>
    %22 = arith.addf %14, %21 : vector<48x256xf32>
    %23 = vector.extract_strided_slice %13 {offsets = [0, 8], sizes = [48, 256], strides = [1, 1]} : vector<48x304xf32> to vector<48x256xf32>
    %c0_18 = arith.constant 0 : index
    %c1 = arith.constant 1 : index
    %24 = vector.load %arg6[%c0_18, %c1] : memref<48x9xf32, #tpu.memory_space<vmem>>, vector<48x1xf32>
    %25 = vector.broadcast %24 : vector<48x1xf32> to vector<48x256xf32>
    %26 = arith.mulf %23, %25 : vector<48x256xf32>
    %27 = arith.addf %22, %26 : vector<48x256xf32>
    %28 = vector.extract_strided_slice %13 {offsets = [0, 9], sizes = [48, 256], strides = [1, 1]} : vector<48x304xf32> to vector<48x256xf32>
    %c1_19 = arith.constant 1 : index
    %c0_20 = arith.constant 0 : index
    %29 = vector.load %arg8[%c1_19, %c0_20] : memref<2x256xf32, #tpu.memory_space<vmem>>, vector<1x256xf32>
    %30 = vector.broadcast %29 : vector<1x256xf32> to vector<48x256xf32>
    %31 = arith.mulf %28, %30 : vector<48x256xf32>
    %c0_21 = arith.constant 0 : index
    %c2 = arith.constant 2 : index
    %32 = vector.load %arg6[%c0_21, %c2] : memref<48x9xf32, #tpu.memory_space<vmem>>, vector<48x1xf32>
    %33 = vector.broadcast %32 : vector<48x1xf32> to vector<48x256xf32>
    %34 = arith.mulf %31, %33 : vector<48x256xf32>
    %35 = arith.addf %27, %34 : vector<48x256xf32>
    %36 = vector.extract_strided_slice %13 {offsets = [0, 23], sizes = [48, 256], strides = [1, 1]} : vector<48x304xf32> to vector<48x256xf32>
    %c0_22 = arith.constant 0 : index
    %c0_23 = arith.constant 0 : index
    %37 = vector.load %arg8[%c0_22, %c0_23] : memref<2x256xf32, #tpu.memory_space<vmem>>, vector<1x256xf32>
    %38 = vector.broadcast %37 : vector<1x256xf32> to vector<48x256xf32>
    %39 = arith.mulf %36, %38 : vector<48x256xf32>
    %c0_24 = arith.constant 0 : index
    %c3 = arith.constant 3 : index
    %40 = vector.load %arg6[%c0_24, %c3] : memref<48x9xf32, #tpu.memory_space<vmem>>, vector<48x1xf32>
    %41 = vector.broadcast %40 : vector<48x1xf32> to vector<48x256xf32>
    %42 = arith.mulf %39, %41 : vector<48x256xf32>
    %43 = arith.addf %35, %42 : vector<48x256xf32>
    %44 = vector.extract_strided_slice %13 {offsets = [0, 24], sizes = [48, 256], strides = [1, 1]} : vector<48x304xf32> to vector<48x256xf32>
    %c0_25 = arith.constant 0 : index
    %c4 = arith.constant 4 : index
    %45 = vector.load %arg6[%c0_25, %c4] : memref<48x9xf32, #tpu.memory_space<vmem>>, vector<48x1xf32>
    %46 = vector.broadcast %45 : vector<48x1xf32> to vector<48x256xf32>
    %47 = arith.mulf %44, %46 : vector<48x256xf32>
    %48 = arith.addf %43, %47 : vector<48x256xf32>
    %49 = vector.extract_strided_slice %13 {offsets = [0, 25], sizes = [48, 256], strides = [1, 1]} : vector<48x304xf32> to vector<48x256xf32>
    %c1_26 = arith.constant 1 : index
    %c0_27 = arith.constant 0 : index
    %50 = vector.load %arg8[%c1_26, %c0_27] : memref<2x256xf32, #tpu.memory_space<vmem>>, vector<1x256xf32>
    %51 = vector.broadcast %50 : vector<1x256xf32> to vector<48x256xf32>
    %52 = arith.mulf %49, %51 : vector<48x256xf32>
    %c0_28 = arith.constant 0 : index
    %c5 = arith.constant 5 : index
    %53 = vector.load %arg6[%c0_28, %c5] : memref<48x9xf32, #tpu.memory_space<vmem>>, vector<48x1xf32>
    %54 = vector.broadcast %53 : vector<48x1xf32> to vector<48x256xf32>
    %55 = arith.mulf %52, %54 : vector<48x256xf32>
    %56 = arith.addf %48, %55 : vector<48x256xf32>
    %57 = vector.extract_strided_slice %13 {offsets = [0, 39], sizes = [48, 256], strides = [1, 1]} : vector<48x304xf32> to vector<48x256xf32>
    %c0_29 = arith.constant 0 : index
    %c0_30 = arith.constant 0 : index
    %58 = vector.load %arg8[%c0_29, %c0_30] : memref<2x256xf32, #tpu.memory_space<vmem>>, vector<1x256xf32>
    %59 = vector.broadcast %58 : vector<1x256xf32> to vector<48x256xf32>
    %60 = arith.mulf %57, %59 : vector<48x256xf32>
    %c0_31 = arith.constant 0 : index
    %c6 = arith.constant 6 : index
    %61 = vector.load %arg6[%c0_31, %c6] : memref<48x9xf32, #tpu.memory_space<vmem>>, vector<48x1xf32>
    %62 = vector.broadcast %61 : vector<48x1xf32> to vector<48x256xf32>
    %63 = arith.mulf %60, %62 : vector<48x256xf32>
    %64 = arith.addf %56, %63 : vector<48x256xf32>
    %65 = vector.extract_strided_slice %13 {offsets = [0, 40], sizes = [48, 256], strides = [1, 1]} : vector<48x304xf32> to vector<48x256xf32>
    %c0_32 = arith.constant 0 : index
    %c7 = arith.constant 7 : index
    %66 = vector.load %arg6[%c0_32, %c7] : memref<48x9xf32, #tpu.memory_space<vmem>>, vector<48x1xf32>
    %67 = vector.broadcast %66 : vector<48x1xf32> to vector<48x256xf32>
    %68 = arith.mulf %65, %67 : vector<48x256xf32>
    %69 = arith.addf %64, %68 : vector<48x256xf32>
    %70 = vector.extract_strided_slice %13 {offsets = [0, 41], sizes = [48, 256], strides = [1, 1]} : vector<48x304xf32> to vector<48x256xf32>
    %c1_33 = arith.constant 1 : index
    %c0_34 = arith.constant 0 : index
    %71 = vector.load %arg8[%c1_33, %c0_34] : memref<2x256xf32, #tpu.memory_space<vmem>>, vector<1x256xf32>
    %72 = vector.broadcast %71 : vector<1x256xf32> to vector<48x256xf32>
    %73 = arith.mulf %70, %72 : vector<48x256xf32>
    %c0_35 = arith.constant 0 : index
    %c8 = arith.constant 8 : index
    %74 = vector.load %arg6[%c0_35, %c8] : memref<48x9xf32, #tpu.memory_space<vmem>>, vector<48x1xf32>
    %75 = vector.broadcast %74 : vector<48x1xf32> to vector<48x256xf32>
    %76 = arith.mulf %73, %75 : vector<48x256xf32>
    %77 = arith.addf %69, %76 : vector<48x256xf32>
    %c0_36 = arith.constant 0 : index
    %c0_37 = arith.constant 0 : index
    %78 = vector.load %arg7[%c0_36, %c0_37] : memref<48x1xf32, #tpu.memory_space<vmem>>, vector<48x1xf32>
    %79 = vector.broadcast %78 : vector<48x1xf32> to vector<48x256xf32>
    %80 = arith.addf %77, %79 : vector<48x256xf32>
    %81 = vector.extract_strided_slice %80 {offsets = [0, 0], sizes = [16, 256], strides = [1, 1]} : vector<48x256xf32> to vector<16x256xf32>
    %82 = vector.extract_strided_slice %80 {offsets = [16, 0], sizes = [16, 256], strides = [1, 1]} : vector<48x256xf32> to vector<16x256xf32>
    %83 = vector.extract_strided_slice %80 {offsets = [32, 0], sizes = [16, 256], strides = [1, 1]} : vector<48x256xf32> to vector<16x256xf32>
    %84 = arith.mulf %81, %81 : vector<16x256xf32>
    %cst_38 = arith.constant dense<0.000000e+00> : vector<16xf32>
    %85 = vector.multi_reduction <add>, %84, %cst_38 [1] : vector<16x256xf32> to vector<16xf32>
    %86 = vector.shape_cast %85 : vector<16xf32> to vector<16x1xf32>
    %cst_39 = arith.constant 1.000000e-24 : f32
    %87 = vector.broadcast %cst_39 : f32 to vector<16x1xf32>
    %88 = arith.maximumf %86, %87 : vector<16x1xf32>
    %89 = math.rsqrt %88 : vector<16x1xf32>
    %90 = vector.broadcast %89 : vector<16x1xf32> to vector<16x256xf32>
    %91 = arith.mulf %81, %90 : vector<16x256xf32>
    %92 = arith.mulf %82, %82 : vector<16x256xf32>
    %cst_40 = arith.constant dense<0.000000e+00> : vector<16xf32>
    %93 = vector.multi_reduction <add>, %92, %cst_40 [1] : vector<16x256xf32> to vector<16xf32>
    %94 = vector.shape_cast %93 : vector<16xf32> to vector<16x1xf32>
    %cst_41 = arith.constant 1.000000e-24 : f32
    %95 = vector.broadcast %cst_41 : f32 to vector<16x1xf32>
    %96 = arith.maximumf %94, %95 : vector<16x1xf32>
    %97 = math.rsqrt %96 : vector<16x1xf32>
    %98 = vector.broadcast %97 : vector<16x1xf32> to vector<16x256xf32>
    %99 = arith.mulf %82, %98 : vector<16x256xf32>
    %cst_42 = arith.constant dense<0.000000e+00> : vector<16x16xf32>
    %100 = tpu.matmul %91, %99, %cst_42 {dimension_numbers = #tpu.dot_dimension_numbers<[1], [1], [0], [0], [0, 0, 1, 0], [], []>} : vector<16x256xf32>, vector<16x256xf32>, vector<16x16xf32> -> vector<16x16xf32>
    %c0_43 = arith.constant 0 : index
    %c0_44 = arith.constant 0 : index
    %101 = vector.load %arg9[%c0_43, %c0_44] : memref<16x1xf32, #tpu.memory_space<vmem>>, vector<16x1xf32>
    %102 = vector.broadcast %101 : vector<16x1xf32> to vector<16x16xf32>
    %103 = arith.mulf %100, %102 : vector<16x16xf32>
    %c0_45 = arith.constant 0 : index
    %c0_46 = arith.constant 0 : index
    %104 = vector.load %arg10[%c0_45, %c0_46] : memref<16x16xf32, #tpu.memory_space<vmem>>, vector<16x16xf32>
    %105 = arith.addf %103, %104 : vector<16x16xf32>
    %cst_47 = arith.constant dense<0xFF800000> : vector<16xf32>
    %106 = vector.multi_reduction <maximumf>, %105, %cst_47 [1] : vector<16x16xf32> to vector<16xf32>
    %107 = vector.shape_cast %106 : vector<16xf32> to vector<16x1xf32>
    %108 = vector.broadcast %107 : vector<16x1xf32> to vector<16x16xf32>
    %109 = arith.subf %105, %108 : vector<16x16xf32>
    %110 = math.exp %109 : vector<16x16xf32>
    %cst_48 = arith.constant dense<0.000000e+00> : vector<16xf32>
    %111 = vector.multi_reduction <add>, %110, %cst_48 [1] : vector<16x16xf32> to vector<16xf32>
    %112 = vector.shape_cast %111 : vector<16xf32> to vector<16x1xf32>
    %113 = vector.broadcast %112 : vector<16x1xf32> to vector<16x16xf32>
    %114 = arith.divf %110, %113 : vector<16x16xf32>
    %cst_49 = arith.constant dense<0.000000e+00> : vector<16x256xf32>
    %115 = tpu.matmul %114, %83, %cst_49 {dimension_numbers = #tpu.dot_dimension_numbers<[1], [0], [0], [1], [0, 0, 1, 1], [], []>} : vector<16x16xf32>, vector<16x256xf32>, vector<16x256xf32> -> vector<16x256xf32>
    %c0_50 = arith.constant 0 : index
    %c0_51 = arith.constant 0 : index
    %116 = vector.load %arg11[%c0_50, %c0_51] : memref<16x16xf32, #tpu.memory_space<vmem>>, vector<16x16xf32>
    %cst_52 = arith.constant dense<0.000000e+00> : vector<16x256xf32>
    %117 = tpu.matmul %116, %115, %cst_52 {dimension_numbers = #tpu.dot_dimension_numbers<[1], [0], [0], [1], [0, 0, 1, 1], [], []>} : vector<16x16xf32>, vector<16x256xf32>, vector<16x256xf32> -> vector<16x256xf32>
    %c0_53 = arith.constant 0 : index
    %c0_54 = arith.constant 0 : index
    %118 = vector.load %arg12[%c0_53, %c0_54] : memref<16x1xf32, #tpu.memory_space<vmem>>, vector<16x1xf32>
    %119 = vector.broadcast %118 : vector<16x1xf32> to vector<16x256xf32>
    %120 = arith.addf %117, %119 : vector<16x256xf32>
    %c0_55 = arith.constant 0 : index
    %c0_56 = arith.constant 0 : index
    %c0_57 = arith.constant 0 : index
    %121 = vector.load %arg13[%c0_55, %c0_56, %c0_57] : memref<1x16x256xf32, #tpu.memory_space<vmem>>, vector<1x16x256xf32>
    %122 = vector.shape_cast %121 : vector<1x16x256xf32> to vector<16x256xf32>
    %123 = vector.shape_cast %120 : vector<16x256xf32> to vector<1x16x256xf32>
    tpu.vector_store %arg13[%c0_55, %c0_56, %c0_57], %123 {strides = array<i32>} : memref<1x16x256xf32, #tpu.memory_space<vmem>>, vector<1x16x256xf32>,
    return
  }
  func.func @transform_0(%arg0: i32) -> (i32, i32, i32) {
    %c0_i32 = arith.constant 0 : i32
    %c0_i32_0 = arith.constant 0 : i32
    %c0_i32_1 = arith.constant 0 : i32
    return %arg0, %c0_i32, %c0_i32_0 : i32, i32, i32
  }
  func.func @transform_1(%arg0: i32) -> (i32, i32, i32) {
    %c0_i32 = arith.constant 0 : i32
    %c0_i32_0 = arith.constant 0 : i32
    %c0_i32_1 = arith.constant 0 : i32
    return %arg0, %c0_i32, %c0_i32_0 : i32, i32, i32
  }
  func.func @transform_2(%arg0: i32) -> (i32, i32) {
    %c0_i32 = arith.constant 0 : i32
    %c0_i32_0 = arith.constant 0 : i32
    %c0_i32_1 = arith.constant 0 : i32
    return %c0_i32, %c0_i32_0 : i32, i32
  }
  func.func @transform_3(%arg0: i32) -> (i32, i32) {
    %c0_i32 = arith.constant 0 : i32
    %c0_i32_0 = arith.constant 0 : i32
    %c0_i32_1 = arith.constant 0 : i32
    return %c0_i32, %c0_i32_0 : i32, i32
  }
  func.func @transform_4(%arg0: i32) -> (i32, i32) {
    %c0_i32 = arith.constant 0 : i32
    %c0_i32_0 = arith.constant 0 : i32
    %c0_i32_1 = arith.constant 0 : i32
    return %c0_i32, %c0_i32_0 : i32, i32
  }
  func.func @transform_5(%arg0: i32) -> (i32, i32) {
    %c0_i32 = arith.constant 0 : i32
    %c0_i32_0 = arith.constant 0 : i32
    %c0_i32_1 = arith.constant 0 : i32
    return %c0_i32, %c0_i32_0 : i32, i32
  }
  func.func @transform_6(%arg0: i32) -> (i32, i32) {
    %c0_i32 = arith.constant 0 : i32
    %c0_i32_0 = arith.constant 0 : i32
    %c0_i32_1 = arith.constant 0 : i32
    return %c0_i32, %c0_i32_0 : i32, i32
  }
  func.func @transform_7(%arg0: i32) -> (i32, i32) {
    %c0_i32 = arith.constant 0 : i32
    %c0_i32_0 = arith.constant 0 : i32
    %c0_i32_1 = arith.constant 0 : i32
    return %c0_i32, %c0_i32_0 : i32, i32
  }
  func.func @transform_8(%arg0: i32) -> (i32, i32) {
    %c0_i32 = arith.constant 0 : i32
    %c0_i32_0 = arith.constant 0 : i32
    %c0_i32_1 = arith.constant 0 : i32
    return %c0_i32, %c0_i32_0 : i32, i32
  }
  func.func @transform_9(%arg0: i32) -> (i32, i32) {
    %c0_i32 = arith.constant 0 : i32
    %c0_i32_0 = arith.constant 0 : i32
    %c0_i32_1 = arith.constant 0 : i32
    return %c0_i32, %c0_i32_0 : i32, i32
  }
  func.func @transform_10(%arg0: i32) -> (i32, i32) {
    %c0_i32 = arith.constant 0 : i32
    %c0_i32_0 = arith.constant 0 : i32
    %c0_i32_1 = arith.constant 0 : i32
    return %c0_i32, %c0_i32_0 : i32, i32
  }
  func.func @transform_11(%arg0: i32) -> (i32, i32) {
    %c0_i32 = arith.constant 0 : i32
    %c0_i32_0 = arith.constant 0 : i32
    %c0_i32_1 = arith.constant 0 : i32
    return %c0_i32, %c0_i32_0 : i32, i32
  }
  func.func @transform_12(%arg0: i32) -> (i32, i32, i32) {
    %c0_i32 = arith.constant 0 : i32
    %c0_i32_0 = arith.constant 0 : i32
    %c0_i32_1 = arith.constant 0 : i32
    return %arg0, %c0_i32, %c0_i32_0 : i32, i32, i32
  }
}

</mosaic_0001>

<llo_original>
// kernel: tpu_custom_call.1
$region0: #{tpu_custom_call.1}
  #allocation0 [shape = 'u32[]', space=smem, size = 0x4, offset = 0x4, fixed_abs, tag = 'smem constant byte address 0x4 - core index']
  #allocation1 [shape = 'u32[144,128]{1,0:T(1,128)}', space=vmem, size = 0x12000, scoped, tag = 'internal scratch']
  %s0 = inlined_call_operand.vmem [shape: f32[2,16,256], index: 0, kind: input, shape index: {}]
  %s1 = inlined_call_operand.vmem [shape: f32[2,16,256], index: 1, kind: input, shape index: {}]
  %s2 = inlined_call_operand.vmem [shape: f32[48,16], index: 2, kind: input, shape index: {}]
  %s3 = inlined_call_operand.vmem [shape: f32[48,16], index: 3, kind: input, shape index: {}]
  %s4 = inlined_call_operand.vmem [shape: f32[48,1], index: 4, kind: input, shape index: {}]
  %s5 = inlined_call_operand.vmem [shape: f32[48,9], index: 5, kind: input, shape index: {}]
  %s6 = inlined_call_operand.vmem [shape: f32[48,1], index: 6, kind: input, shape index: {}]
  %s7 = inlined_call_operand.vmem [shape: f32[2,256], index: 7, kind: input, shape index: {}]
  %s8 = inlined_call_operand.vmem [shape: f32[16,1], index: 8, kind: input, shape index: {}]
  %s9 = inlined_call_operand.vmem [shape: f32[16,16], index: 9, kind: input, shape index: {}]
  %s10 = inlined_call_operand.vmem [shape: f32[16,16], index: 10, kind: input, shape index: {}]
  %s11 = inlined_call_operand.vmem [shape: f32[16,1], index: 11, kind: input, shape index: {}]
  %s12 = inlined_call_operand.hbm [shape: f32[2,16,256], index: 12, kind: output, shape index: {}]
  %s13 = sld [smem:[#allocation0]]
  $region81: #{tpu_custom_call.1} parent=0
    _
  %s15 = ssub.s32 1, %s13
  %s16 = scalar_select 0, %s15, %s13
  $region1: #{tpu_custom_call.1} parent=0
    #allocation2 [shape = 'u8[32768]{0}', space=vmem, size = 0x8000, scoped, tag = 'output window, operand 0']
    #allocation3 [shape = 's32[2]{0}', space=sflag, size = 0x8, scoped, tag = 'scoped memory for tpu_custom_call.1']
    %17 = vsyncpa [#allocation3], 0
    %s18 = scalar_lea.sflag [#allocation3], 1
    %19 = vsyncpa %s18, 0
    loop: start=0, step=1, limit=4
    $region2: #{tpu_custom_call.1} parent=1 // loop_pre_header
      _
    $region3: #{tpu_custom_call.1} parent=1 // loop_header
      %s21 = sphi 0, %s25
      %p22 = scmp.ge.s32.totalorder %s21, 4
      %s31 = sphi 0, %s33
      %s34 = sphi 0, %s31
      %s35 = sphi 0, %s34
      %s51 = sphi 0, %s35
      %s57 = sphi 0, %s59
      %s60 = sphi 0, %s57
      %s61 = sphi 0, %s60
      %s77 = sphi 0, %s61
      %s81 = sphi 0, %s81
      %s83 = sphi 0, %s81
      %s84 = sphi 0, %s83
      %s98 = sphi 0, %s84
      %s102 = sphi 0, %s102
      %s104 = sphi 0, %s102
      %s105 = sphi 0, %s104
      %s119 = sphi 0, %s105
      %s123 = sphi 0, %s123
      %s125 = sphi 0, %s123
      %s126 = sphi 0, %s125
      %s140 = sphi 0, %s126
      %s144 = sphi 0, %s144
      %s146 = sphi 0, %s144
      %s147 = sphi 0, %s146
      %s161 = sphi 0, %s147
      %s165 = sphi 0, %s165
      %s167 = sphi 0, %s165
      %s168 = sphi 0, %s167
      %s182 = sphi 0, %s168
      %s186 = sphi 0, %s186
      %s188 = sphi 0, %s186
      %s189 = sphi 0, %s188
      %s203 = sphi 0, %s189
      %s207 = sphi 0, %s207
      %s209 = sphi 0, %s207
      %s210 = sphi 0, %s209
      %s224 = sphi 0, %s210
      %s228 = sphi 0, %s228
      %s230 = sphi 0, %s228
      %s231 = sphi 0, %s230
      %s245 = sphi 0, %s231
      %s249 = sphi 0, %s249
      %s251 = sphi 0, %s249
      %s252 = sphi 0, %s251
      %s266 = sphi 0, %s252
      %s270 = sphi 0, %s270
      %s272 = sphi 0, %s270
      %s273 = sphi 0, %s272
      %s287 = sphi 0, %s273
      %s293 = sphi 0, %s295
      %s296 = sphi 0, %s293
      %s297 = sphi 0, %s296
      %s313 = sphi 0, %s297
    $region4: #{tpu_custom_call.1} parent=1 // loop_header_branch
      %24 = sbr.rel (%p22) target = $region8
    $region5: #{tpu_custom_call.1} parent=1 // loop_body
      %s26 = ssub.s32 %s21, 1
      %s27 = ssub.s32 %s21, 2
      %s28 = sadd.s32 %s21, 1
      %s29 = ssub.s32 %s21, %s28
      %p30 = scmp.eq.s32.totalorder %s29, 0
      %s32 = sadd.s32 %s31, 1
      %s33 = scalar_select %p30, %s31, %s32
      %p36 = pneg %p30
      %p37 = scmp.eq.s32.totalorder %s21, 1
      %p38 = por %p36, %p37
      %p39 = scmp.ne.s32.totalorder %s31, %s34
      %p40 = scmp.eq.s32.totalorder %s21, 0
      %p41 = por %p39, %p40
      %p42 = scmp.ne.s32.totalorder %s31, %s34
      %p43 = scmp.eq.s32.totalorder %s26, 1
      %p44 = por %p42, %p43
      %p45 = scmp.ne.s32.totalorder %s34, %s35
      %p46 = scmp.eq.s32.totalorder %s26, 0
      %p47 = por %p45, %p46
      %p48 = scmp.ne.s32.totalorder %s34, %s35
      %p49 = scmp.eq.s32.totalorder %s27, 1
      %p50 = por %p48, %p49
      %p52 = scmp.ne.s32.totalorder %s35, %s51
      %p53 = scmp.eq.s32.totalorder %s27, 0
      %p54 = por %p52, %p53
      %s55 = ssub.s32 %s21, %s28
      %p56 = scmp.eq.s32.totalorder %s55, 0
      %s58 = sadd.s32 %s57, 1
      %s59 = scalar_select %p56, %s57, %s58
      %p62 = pneg %p56
      %p63 = scmp.eq.s32.totalorder %s21, 1
      %p64 = por %p62, %p63
      %p65 = scmp.ne.s32.totalorder %s57, %s60
      %p66 = scmp.eq.s32.totalorder %s21, 0
      %p67 = por %p65, %p66
      %p68 = scmp.ne.s32.totalorder %s57, %s60
      %p69 = scmp.eq.s32.totalorder %s26, 1
      %p70 = por %p68, %p69
      %p71 = scmp.ne.s32.totalorder %s60, %s61
      %p72 = scmp.eq.s32.totalorder %s26, 0
      %p73 = por %p71, %p72
      %p74 = scmp.ne.s32.totalorder %s60, %s61
      %p75 = scmp.eq.s32.totalorder %s27, 1
      %p76 = por %p74, %p75
      %p78 = scmp.ne.s32.totalorder %s61, %s77
      %p79 = scmp.eq.s32.totalorder %s27, 0
      %p80 = por %p78, %p79
      %s82 = sadd.s32 %s81, 1
      %p85 = scmp.eq.s32.totalorder %s21, 1
      %p86 = scmp.ne.s32.totalorder %s81, %s83
      %p87 = scmp.eq.s32.totalorder %s21, 0
      %p88 = por %p86, %p87
      %p89 = scmp.ne.s32.totalorder %s81, %s83
      %p90 = scmp.eq.s32.totalorder %s26, 1
      %p91 = por %p89, %p90
      %p92 = scmp.ne.s32.totalorder %s83, %s84
      %p93 = scmp.eq.s32.totalorder %s26, 0
      %p94 = por %p92, %p93
      %p95 = scmp.ne.s32.totalorder %s83, %s84
      %p96 = scmp.eq.s32.totalorder %s27, 1
      %p97 = por %p95, %p96
      %p99 = scmp.ne.s32.totalorder %s84, %s98
      %p100 = scmp.eq.s32.totalorder %s27, 0
      %p101 = por %p99, %p100
      %s103 = sadd.s32 %s102, 1
      %p106 = scmp.eq.s32.totalorder %s21, 1
      %p107 = scmp.ne.s32.totalorder %s102, %s104
      %p108 = scmp.eq.s32.totalorder %s21, 0
      %p109 = por %p107, %p108
      %p110 = scmp.ne.s32.totalorder %s102, %s104
      %p111 = scmp.eq.s32.totalorder %s26, 1
      %p112 = por %p110, %p111
      %p113 = scmp.ne.s32.totalorder %s104, %s105
      %p114 = scmp.eq.s32.totalorder %s26, 0
      %p115 = por %p113, %p114
      %p116 = scmp.ne.s32.totalorder %s104, %s105
      %p117 = scmp.eq.s32.totalorder %s27, 1
      %p118 = por %p116, %p117
      %p120 = scmp.ne.s32.totalorder %s105, %s119
      %p121 = scmp.eq.s32.totalorder %s27, 0
      %p122 = por %p120, %p121
      %s124 = sadd.s32 %s123, 1
      %p127 = scmp.eq.s32.totalorder %s21, 1
      %p128 = scmp.ne.s32.totalorder %s123, %s125
      %p129 = scmp.eq.s32.totalorder %s21, 0
      %p130 = por %p128, %p129
      %p131 = scmp.ne.s32.totalorder %s123, %s125
      %p132 = scmp.eq.s32.totalorder %s26, 1
      %p133 = por %p131, %p132
      %p134 = scmp.ne.s32.totalorder %s125, %s126
      %p135 = scmp.eq.s32.totalorder %s26, 0
      %p136 = por %p134, %p135
      %p137 = scmp.ne.s32.totalorder %s125, %s126
      %p138 = scmp.eq.s32.totalorder %s27, 1
      %p139 = por %p137, %p138
      %p141 = scmp.ne.s32.totalorder %s126, %s140
      %p142 = scmp.eq.s32.totalorder %s27, 0
      %p143 = por %p141, %p142
      %s145 = sadd.s32 %s144, 1
      %p148 = scmp.eq.s32.totalorder %s21, 1
      %p149 = scmp.ne.s32.totalorder %s144, %s146
      %p150 = scmp.eq.s32.totalorder %s21, 0
      %p151 = por %p149, %p150
      %p152 = scmp.ne.s32.totalorder %s144, %s146
      %p153 = scmp.eq.s32.totalorder %s26, 1
      %p154 = por %p152, %p153
      %p155 = scmp.ne.s32.totalorder %s146, %s147
      %p156 = scmp.eq.s32.totalorder %s26, 0
      %p157 = por %p155, %p156
      %p158 = scmp.ne.s32.totalorder %s146, %s147
      %p159 = scmp.eq.s32.totalorder %s27, 1
      %p160 = por %p158, %p159
      %p162 = scmp.ne.s32.totalorder %s147, %s161
      %p163 = scmp.eq.s32.totalorder %s27, 0
      %p164 = por %p162, %p163
      %s166 = sadd.s32 %s165, 1
      %p169 = scmp.eq.s32.totalorder %s21, 1
      %p170 = scmp.ne.s32.totalorder %s165, %s167
      %p171 = scmp.eq.s32.totalorder %s21, 0
      %p172 = por %p170, %p171
      %p173 = scmp.ne.s32.totalorder %s165, %s167
      %p174 = scmp.eq.s32.totalorder %s26, 1
      %p175 = por %p173, %p174
      %p176 = scmp.ne.s32.totalorder %s167, %s168
      %p177 = scmp.eq.s32.totalorder %s26, 0
      %p178 = por %p176, %p177
      %p179 = scmp.ne.s32.totalorder %s167, %s168
      %p180 = scmp.eq.s32.totalorder %s27, 1
      %p181 = por %p179, %p180
      %p183 = scmp.ne.s32.totalorder %s168, %s182
      %p184 = scmp.eq.s32.totalorder %s27, 0
      %p185 = por %p183, %p184
      %s187 = sadd.s32 %s186, 1
      %p190 = scmp.eq.s32.totalorder %s21, 1
      %p191 = scmp.ne.s32.totalorder %s186, %s188
      %p192 = scmp.eq.s32.totalorder %s21, 0
      %p193 = por %p191, %p192
      %p194 = scmp.ne.s32.totalorder %s186, %s188
      %p195 = scmp.eq.s32.totalorder %s26, 1
      %p196 = por %p194, %p195
      %p197 = scmp.ne.s32.totalorder %s188, %s189
      %p198 = scmp.eq.s32.totalorder %s26, 0
      %p199 = por %p197, %p198
      %p200 = scmp.ne.s32.totalorder %s188, %s189
      %p201 = scmp.eq.s32.totalorder %s27, 1
      %p202 = por %p200, %p201
      %p204 = scmp.ne.s32.totalorder %s189, %s203
      %p205 = scmp.eq.s32.totalorder %s27, 0
      %p206 = por %p204, %p205
      %s208 = sadd.s32 %s207, 1
      %p211 = scmp.eq.s32.totalorder %s21, 1
      %p212 = scmp.ne.s32.totalorder %s207, %s209
      %p213 = scmp.eq.s32.totalorder %s21, 0
      %p214 = por %p212, %p213
      %p215 = scmp.ne.s32.totalorder %s207, %s209
      %p216 = scmp.eq.s32.totalorder %s26, 1
      %p217 = por %p215, %p216
      %p218 = scmp.ne.s32.totalorder %s209, %s210
      %p219 = scmp.eq.s32.totalorder %s26, 0
      %p220 = por %p218, %p219
      %p221 = scmp.ne.s32.totalorder %s209, %s210
      %p222 = scmp.eq.s32.totalorder %s27, 1
      %p223 = por %p221, %p222
      %p225 = scmp.ne.s32.totalorder %s210, %s224
      %p226 = scmp.eq.s32.totalorder %s27, 0
      %p227 = por %p225, %p226
      %s229 = sadd.s32 %s228, 1
      %p232 = scmp.eq.s32.totalorder %s21, 1
      %p233 = scmp.ne.s32.totalorder %s228, %s230
      %p234 = scmp.eq.s32.totalorder %s21, 0
      %p235 = por %p233, %p234
      %p236 = scmp.ne.s32.totalorder %s228, %s230
      %p237 = scmp.eq.s32.totalorder %s26, 1
      %p238 = por %p236, %p237
      %p239 = scmp.ne.s32.totalorder %s230, %s231
      %p240 = scmp.eq.s32.totalorder %s26, 0
      %p241 = por %p239, %p240
      %p242 = scmp.ne.s32.totalorder %s230, %s231
      %p243 = scmp.eq.s32.totalorder %s27, 1
      %p244 = por %p242, %p243
      %p246 = scmp.ne.s32.totalorder %s231, %s245
      %p247 = scmp.eq.s32.totalorder %s27, 0
      %p248 = por %p246, %p247
      %s250 = sadd.s32 %s249, 1
      %p253 = scmp.eq.s32.totalorder %s21, 1
      %p254 = scmp.ne.s32.totalorder %s249, %s251
      %p255 = scmp.eq.s32.totalorder %s21, 0
      %p256 = por %p254, %p255
      %p257 = scmp.ne.s32.totalorder %s249, %s251
      %p258 = scmp.eq.s32.totalorder %s26, 1
      %p259 = por %p257, %p258
      %p260 = scmp.ne.s32.totalorder %s251, %s252
      %p261 = scmp.eq.s32.totalorder %s26, 0
      %p262 = por %p260, %p261
      %p263 = scmp.ne.s32.totalorder %s251, %s252
      %p264 = scmp.eq.s32.totalorder %s27, 1
      %p265 = por %p263, %p264
      %p267 = scmp.ne.s32.totalorder %s252, %s266
      %p268 = scmp.eq.s32.totalorder %s27, 0
      %p269 = por %p267, %p268
      %s271 = sadd.s32 %s270, 1
      %p274 = scmp.eq.s32.totalorder %s21, 1
      %p275 = scmp.ne.s32.totalorder %s270, %s272
      %p276 = scmp.eq.s32.totalorder %s21, 0
      %p277 = por %p275, %p276
      %p278 = scmp.ne.s32.totalorder %s270, %s272
      %p279 = scmp.eq.s32.totalorder %s26, 1
      %p280 = por %p278, %p279
      %p281 = scmp.ne.s32.totalorder %s272, %s273
      %p282 = scmp.eq.s32.totalorder %s26, 0
      %p283 = por %p281, %p282
      %p284 = scmp.ne.s32.totalorder %s272, %s273
      %p285 = scmp.eq.s32.totalorder %s27, 1
      %p286 = por %p284, %p285
      %p288 = scmp.ne.s32.totalorder %s273, %s287
      %p289 = scmp.eq.s32.totalorder %s27, 0
      %p290 = por %p288, %p289
      %s291 = ssub.s32 %s21, %s28
      %p292 = scmp.eq.s32.totalorder %s291, 0
      %s294 = sadd.s32 %s293, 1
      %s295 = scalar_select %p292, %s293, %s294
      %p298 = pneg %p292
      %p299 = scmp.eq.s32.totalorder %s21, 1
      %p300 = por %p298, %p299
      %p301 = scmp.ne.s32.totalorder %s293, %s296
      %p302 = scmp.eq.s32.totalorder %s21, 0
      %p303 = por %p301, %p302
      %p304 = scmp.ne.s32.totalorder %s293, %s296
      %p305 = scmp.eq.s32.totalorder %s26, 1
      %p306 = por %p304, %p305
      %p307 = scmp.ne.s32.totalorder %s296, %s297
      %p308 = scmp.eq.s32.totalorder %s26, 0
      %p309 = por %p307, %p308
      %p310 = scmp.ne.s32.totalorder %s296, %s297
      %p311 = scmp.eq.s32.totalorder %s27, 1
      %p312 = por %p310, %p311
      %p314 = scmp.ne.s32.totalorder %s297, %s313
      %p315 = scmp.eq.s32.totalorder %s27, 0
      %p316 = por %p314, %p315
      %p317 = scmp.le.s32.totalorder 1, %s21
      %p318 = scmp.lt.s32.totalorder %s21, 3
      %p319 = pnand %p317, %p318
      %p320 = pneg %p319
      // Predicated region
      $region9: #{tpu_custom_call.1} parent=5 // pred_check
        _
      $region10: #{tpu_custom_call.1} parent=5 // pred_check_branch
        %322 = sbr.rel (%p319) target = $region12
      $region11: #{tpu_custom_call.1} parent=5 // pred_region
        %s323 = ssub.s32 %s21, 1
        // Predicated region
        $region13: #{tpu_custom_call.1} parent=11 // pred_check
          %p324 = pneg %p94
        $region14: #{tpu_custom_call.1} parent=11 // pred_check_branch
          %326 = sbr.rel (%p324) target = $region16
        $region15: #{tpu_custom_call.1} parent=11 // pred_region
          _
        $region16: #{tpu_custom_call.1} parent=11 // pred_fallthru
          _
        // Predicated region
        $region17: #{tpu_custom_call.1} parent=11 // pred_check
          %p327 = pneg %p115
        $region18: #{tpu_custom_call.1} parent=11 // pred_check_branch
          %329 = sbr.rel (%p327) target = $region20
        $region19: #{tpu_custom_call.1} parent=11 // pred_region
          _
        $region20: #{tpu_custom_call.1} parent=11 // pred_fallthru
          _
        // Predicated region
        $region21: #{tpu_custom_call.1} parent=11 // pred_check
          %p330 = pneg %p136
        $region22: #{tpu_custom_call.1} parent=11 // pred_check_branch
          %332 = sbr.rel (%p330) target = $region24
        $region23: #{tpu_custom_call.1} parent=11 // pred_region
          _
        $region24: #{tpu_custom_call.1} parent=11 // pred_fallthru
          _
        // Predicated region
        $region25: #{tpu_custom_call.1} parent=11 // pred_check
          %p333 = pneg %p157
        $region26: #{tpu_custom_call.1} parent=11 // pred_check_branch
          %335 = sbr.rel (%p333) target = $region28
        $region27: #{tpu_custom_call.1} parent=11 // pred_region
          _
        $region28: #{tpu_custom_call.1} parent=11 // pred_fallthru
          _
        // Predicated region
        $region29: #{tpu_custom_call.1} parent=11 // pred_check
          %p336 = pneg %p178
        $region30: #{tpu_custom_call.1} parent=11 // pred_check_branch
          %338 = sbr.rel (%p336) target = $region32
        $region31: #{tpu_custom_call.1} parent=11 // pred_region
          _
        $region32: #{tpu_custom_call.1} parent=11 // pred_fallthru
          _
        // Predicated region
        $region33: #{tpu_custom_call.1} parent=11 // pred_check
          %p339 = pneg %p199
        $region34: #{tpu_custom_call.1} parent=11 // pred_check_branch
          %341 = sbr.rel (%p339) target = $region36
        $region35: #{tpu_custom_call.1} parent=11 // pred_region
          _
        $region36: #{tpu_custom_call.1} parent=11 // pred_fallthru
          _
        // Predicated region
        $region37: #{tpu_custom_call.1} parent=11 // pred_check
          %p342 = pneg %p220
        $region38: #{tpu_custom_call.1} parent=11 // pred_check_branch
          %344 = sbr.rel (%p342) target = $region40
        $region39: #{tpu_custom_call.1} parent=11 // pred_region
          _
        $region40: #{tpu_custom_call.1} parent=11 // pred_fallthru
          _
        // Predicated region
        $region41: #{tpu_custom_call.1} parent=11 // pred_check
          %p345 = pneg %p241
        $region42: #{tpu_custom_call.1} parent=11 // pred_check_branch
          %347 = sbr.rel (%p345) target = $region44
        $region43: #{tpu_custom_call.1} parent=11 // pred_region
          _
        $region44: #{tpu_custom_call.1} parent=11 // pred_fallthru
          _
        // Predicated region
        $region45: #{tpu_custom_call.1} parent=11 // pred_check
          %p348 = pneg %p262
        $region46: #{tpu_custom_call.1} parent=11 // pred_check_branch
          %350 = sbr.rel (%p348) target = $region48
        $region47: #{tpu_custom_call.1} parent=11 // pred_region
          _
        $region48: #{tpu_custom_call.1} parent=11 // pred_fallthru
          _
        // Predicated region
        $region49: #{tpu_custom_call.1} parent=11 // pred_check
          %p351 = pneg %p283
        $region50: #{tpu_custom_call.1} parent=11 // pred_check_branch
          %353 = sbr.rel (%p351) target = $region52
        $region51: #{tpu_custom_call.1} parent=11 // pred_region
          _
        $region52: #{tpu_custom_call.1} parent=11 // pred_fallthru
          _
      $region12: #{tpu_custom_call.1} parent=5 // pred_fallthru
        _
      %p354 = scmp.lt.s32.totalorder %s21, 2
      // Predicated region
      $region53: #{tpu_custom_call.1} parent=5 // pred_check
        %p355 = pneg %p354
      $region54: #{tpu_custom_call.1} parent=5 // pred_check_branch
        %357 = sbr.rel (%p355) target = $region56
      $region55: #{tpu_custom_call.1} parent=5 // pred_region
        // Predicated region
        $region57: #{tpu_custom_call.1} parent=55 // pred_check
          %p358 = pneg %p41
        $region58: #{tpu_custom_call.1} parent=55 // pred_check_branch
          %360 = sbr.rel (%p358) target = $region60
        $region59: #{tpu_custom_call.1} parent=55 // pred_region
          %p361 = scmp.lt.s32.totalorder %s21, 1
          %s362 = scalar_select %p361, %s21, 1
          %s363 = smul.addr %s362, 4
          %s364 = smul.addr %s363, 8
          %s365 = scalar_lea.vmem %s0, %s364
        $region60: #{tpu_custom_call.1} parent=55 // pred_fallthru
          _
        // Predicated region
        $region61: #{tpu_custom_call.1} parent=55 // pred_check
          %p366 = pneg %p67
        $region62: #{tpu_custom_call.1} parent=55 // pred_check_branch
          %368 = sbr.rel (%p366) target = $region64
        $region63: #{tpu_custom_call.1} parent=55 // pred_region
          %p369 = scmp.lt.s32.totalorder %s21, 1
          %s370 = scalar_select %p369, %s21, 1
          %s371 = smul.addr %s370, 4
          %s372 = smul.addr %s371, 8
          %s373 = scalar_lea.vmem %s1, %s372
        $region64: #{tpu_custom_call.1} parent=55 // pred_fallthru
          _
      $region56: #{tpu_custom_call.1} parent=5 // pred_fallthru
        _
      %p374 = scmp.le.s32.totalorder 1, %s21
      %p375 = scmp.lt.s32.totalorder %s21, 3
      %p376 = pnand %p374, %p375
      %p377 = pneg %p376
      // Predicated region
      $region65: #{tpu_custom_call.1} parent=5 // pred_check
        _
      $region66: #{tpu_custom_call.1} parent=5 // pred_check_branch
        %379 = sbr.rel (%p376) target = $region68
      $region67: #{tpu_custom_call.1} parent=5 // pred_region
        %s380 = ssub.s32 %s21, 1
        %p381 = scmp.lt.s32.totalorder %s26, 1
        %s382 = scalar_select %p381, %s26, 1
        %s383 = smul.addr %s382, 4
        %s384 = smul.addr %s383, 8
        %s385 = scalar_lea.vmem %s0, %s384
        %p386 = pneg %p47
        %p387 = pneg %p44
        %p388 = scmp.lt.s32.totalorder %s26, 1
        %s389 = scalar_select %p388, %s26, 1
        %s390 = smul.addr %s389, 4
        %s391 = smul.addr %s390, 8
        %s392 = scalar_lea.vmem %s1, %s391
        %p393 = pneg %p73
        %p394 = pneg %p70
        %p395 = pneg %p94
        %p396 = pneg %p91
        %p397 = pneg %p115
        %p398 = pneg %p112
        %p399 = pneg %p136
        %p400 = pneg %p133
        %p401 = pneg %p157
        %p402 = pneg %p154
        %p403 = pneg %p178
        %p404 = pneg %p175
        %p405 = pneg %p199
        %p406 = pneg %p196
        %p407 = pneg %p220
        %p408 = pneg %p217
        %p409 = pneg %p241
        %p410 = pneg %p238
        %p411 = pneg %p262
        %p412 = pneg %p259
        %p413 = pneg %p283
        %p414 = pneg %p280
        %p415 = pneg %p309
        %p416 = pneg %p306
        %s417 = sand.u32 %s296, 1
        %s418 = scalar_lea.sflag [#allocation3], %s417
        %s419 = sand.u32 %s296, 1
        %s420 = smul.addr %s419, 32
        %s421 = scalar_lea.vmem [#allocation2], %s420
        %p422 = scmp.lt.s32.totalorder %s26, 1
        %s423 = scalar_select %p422, %s26, 1
        %s424 = smul.addr %s423, 4
        %s425 = smul.addr %s424, 8
        %s426 = scalar_lea.vmem %s0, %s425
        %p427 = scmp.lt.s32.totalorder %s26, 1
        %s428 = scalar_select %p427, %s26, 1
        %s429 = smul.addr %s428, 4
        %s430 = smul.addr %s429, 8
        %s431 = scalar_lea.vmem %s1, %s430
        %v432 = vld [vmem:[%s426] sm:$0xff]
        %v433 = vld [vmem:[%s426 + $0x8] sm:$0xff]
        %v434 = vld [vmem:[%s426 + $0x10] sm:$0xff]
        %v435 = vld [vmem:[%s426 + $0x18] sm:$0xff]
        %v436 = vld [vmem:[%s431] sm:$0xff]
        %v437 = vld [vmem:[%s431 + $0x8] sm:$0xff]
        %v438 = vld [vmem:[%s431 + $0x10] sm:$0xff]
        %v439 = vld [vmem:[%s431 + $0x18] sm:$0xff]
        %v440 = vld [vmem:[%s2] sm:$0xff]
        %v441 = vld [vmem:[%s2 + $0x8] sm:$0xff]
        %v442 = vld [vmem:[%s2 + $0x10] sm:$0xff]
        %v443 = vld [vmem:[%s2 + $0x18] sm:$0xff]
        %v444 = vld [vmem:[%s2 + $0x20] sm:$0xff]
        %v445 = vld [vmem:[%s2 + $0x28] sm:$0xff]
        %v446 = vld [vmem:[%s3] sm:$0xff]
        %v447 = vld [vmem:[%s3 + $0x8] sm:$0xff]
        %v448 = vld [vmem:[%s3 + $0x10] sm:$0xff]
        %v449 = vld [vmem:[%s3 + $0x18] sm:$0xff]
        %v450 = vld [vmem:[%s3 + $0x20] sm:$0xff]
        %v451 = vld [vmem:[%s3 + $0x28] sm:$0xff]
        %vm452 = vcmask 130048
        %v454 = vsel %vm452, %v446, 0
        %v457 = vsel %vm452, %v447, 0
        %v460 = vsel %vm452, %v448, 0
        %v463 = vsel %vm452, %v449, 0
        %v466 = vsel %vm452, %v450, 0
        %v469 = vsel %vm452, %v451, 0
        %471 = vmatprep.subr.mxu0 %v433
        %472 = vmatpush1.msra.mxu0 %v432
        %473 = vmatprep.subr.mxu0 %v435
        %474 = vmatpush1.msra.mxu0 %v434
        %475 = vmatprep.subr.mxu0 0.0
        %476 = vmatpush1.msra.mxu0 0.0
        %477 = vmatprep.subr.mxu0 0.0
        %478 = vmatpush1.msra.mxu0 0.0
        %479 = vmatprep.subr.mxu0 0.0
        %480 = vmatpush1.msra.mxu0 0.0
        %481 = vmatprep.subr.mxu0 0.0
        %482 = vmatpush1.msra.mxu0 0.0
        %483 = vmatprep.subr.mxu0 0.0
        %484 = vmatpush1.msra.mxu0 0.0
        %485 = vmatprep.subr.mxu0 0.0
        %486 = vmatpush1.msra.mxu0 0.0
        %487 = vmatprep.subr.mxu0 0.0
        %488 = vmatpush1.msra.mxu0 0.0
        %489 = vmatprep.subr.mxu0 0.0
        %490 = vmatpush1.msra.mxu0 0.0
        %491 = vmatprep.subr.mxu0 0.0
        %492 = vmatpush1.msra.mxu0 0.0
        %493 = vmatprep.subr.mxu0 0.0
        %494 = vmatpush1.msra.mxu0 0.0
        %495 = vmatprep.subr.mxu0 0.0
        %496 = vmatpush1.msra.mxu0 0.0
        %497 = vmatprep.subr.mxu0 0.0
        %498 = vmatpush1.msra.mxu0 0.0
        %499 = vmatprep.subr.mxu0 0.0
        %500 = vmatpush1.msra.mxu0 0.0
        %501 = vmatprep.subr.mxu0 0.0
        %502 = vmatpush1.msra.mxu0 0.0
        %503 = vmatprep.subr.mxu0 0.0
        %504 = vmatpush1.msra.mxu0 0.0
        %505 = vmatprep.subr.mxu0 0.0
        %506 = vmatpush1.msra.mxu0 0.0
        %507 = vmatprep.subr.mxu0 0.0
        %508 = vmatpush1.msra.mxu0 0.0
        %509 = vmatprep.subr.mxu0 0.0
        %510 = vmatpush1.msra.mxu0 0.0
        %511 = vmatprep.subr.mxu0 0.0
        %512 = vmatpush1.msra.mxu0 0.0
        %513 = vmatprep.subr.mxu0 0.0
        %514 = vmatpush1.msra.mxu0 0.0
        %515 = vmatprep.subr.mxu0 0.0
        %516 = vmatpush1.msra.mxu0 0.0
        %517 = vmatprep.subr.mxu0 0.0
        %518 = vmatpush1.msra.mxu0 0.0
        %519 = vmatprep.subr.mxu0 0.0
        %520 = vmatpush1.msra.mxu0 0.0
        %521 = vmatprep.subr.mxu0 0.0
        %522 = vmatpush1.msra.mxu0 0.0
        %523 = vmatprep.subr.mxu0 0.0
        %524 = vmatpush1.msra.mxu0 0.0
        %525 = vmatprep.subr.mxu0 0.0
        %526 = vmatpush1.msra.mxu0 0.0
        %527 = vmatprep.subr.mxu0 0.0
        %528 = vmatpush1.msra.mxu0 0.0
        %529 = vmatprep.subr.mxu0 0.0
        %530 = vmatpush1.msra.mxu0 0.0
        %531 = vmatprep.subr.mxu0 0.0
        %532 = vmatpush1.msra.mxu0 0.0
        %533 = vmatprep.subr.mxu0 0.0
        %534 = vmatpush1.msra.mxu0 0.0
        %535 = vmatprep.mubr.f32.mxu0 0.0
        %536 = vmatmul.mubr.f32.gmra.mrb[0].mxu0 %v454
        %v537 = vpop.f32.mrb[0].mxu0
        %v538 = vadd.f32 0.0, %v537
        %v539 = vpop.f32.mrb[0].mxu0
        %v540 = vadd.f32 0.0, %v539
        %541 = vmatprep.mubr.f32.mxu0 0.0
        %542 = vmatmul.mubr.f32.gmra.mrb[0].mxu0 %v457
        %v543 = vpop.f32.mrb[0].mxu0
        %v544 = vadd.f32 0.0, %v543
        %v545 = vpop.f32.mrb[0].mxu0
        %v546 = vadd.f32 0.0, %v545
        %547 = vmatprep.mubr.f32.mxu0 0.0
        %548 = vmatmul.mubr.f32.gmra.mrb[0].mxu0 %v460
        %v549 = vpop.f32.mrb[0].mxu0
        %v550 = vadd.f32 0.0, %v549
        %v551 = vpop.f32.mrb[0].mxu0
        %v552 = vadd.f32 0.0, %v551
        %553 = vmatprep.mubr.f32.mxu0 0.0
        %554 = vmatmul.mubr.f32.gmra.mrb[0].mxu0 %v463
        %v555 = vpop.f32.mrb[0].mxu0
        %v556 = vadd.f32 0.0, %v555
        %v557 = vpop.f32.mrb[0].mxu0
        %v558 = vadd.f32 0.0, %v557
        %559 = vmatprep.mubr.f32.mxu0 0.0
        %560 = vmatmul.mubr.f32.gmra.mrb[0].mxu0 %v466
        %v561 = vpop.f32.mrb[0].mxu0
        %v562 = vadd.f32 0.0, %v561
        %v563 = vpop.f32.mrb[0].mxu0
        %v564 = vadd.f32 0.0, %v563
        %565 = vmatprep.mubr.f32.mxu0 0.0
        %566 = vmatmul.mubr.f32.gmra.mrb[0].mxu0 %v469
        %v567 = vpop.f32.mrb[0].mxu0
        %v568 = vadd.f32 0.0, %v567
        %v569 = vpop.f32.mrb[0].mxu0
        %v570 = vadd.f32 0.0, %v569
        %571 = vdwg.mxu0
        %v573 = vsel %vm452, %v440, 0
        %v576 = vsel %vm452, %v441, 0
        %v579 = vsel %vm452, %v442, 0
        %v582 = vsel %vm452, %v443, 0
        %v585 = vsel %vm452, %v444, 0
        %v588 = vsel %vm452, %v445, 0
        %590 = vmatprep.subr.mxu0 %v437
        %591 = vmatpush1.msra.mxu0 %v436
        %592 = vmatprep.subr.mxu0 %v439
        %593 = vmatpush1.msra.mxu0 %v438
        %594 = vmatprep.subr.mxu0 0.0
        %595 = vmatpush1.msra.mxu0 0.0
        %596 = vmatprep.subr.mxu0 0.0
        %597 = vmatpush1.msra.mxu0 0.0
        %598 = vmatprep.subr.mxu0 0.0
        %599 = vmatpush1.msra.mxu0 0.0
        %600 = vmatprep.subr.mxu0 0.0
        %601 = vmatpush1.msra.mxu0 0.0
        %602 = vmatprep.subr.mxu0 0.0
        %603 = vmatpush1.msra.mxu0 0.0
        %604 = vmatprep.subr.mxu0 0.0
        %605 = vmatpush1.msra.mxu0 0.0
        %606 = vmatprep.subr.mxu0 0.0
        %607 = vmatpush1.msra.mxu0 0.0
        %608 = vmatprep.subr.mxu0 0.0
        %609 = vmatpush1.msra.mxu0 0.0
        %610 = vmatprep.subr.mxu0 0.0
        %611 = vmatpush1.msra.mxu0 0.0
        %612 = vmatprep.subr.mxu0 0.0
        %613 = vmatpush1.msra.mxu0 0.0
        %614 = vmatprep.subr.mxu0 0.0
        %615 = vmatpush1.msra.mxu0 0.0
        %616 = vmatprep.subr.mxu0 0.0
        %617 = vmatpush1.msra.mxu0 0.0
        %618 = vmatprep.subr.mxu0 0.0
        %619 = vmatpush1.msra.mxu0 0.0
        %620 = vmatprep.subr.mxu0 0.0
        %621 = vmatpush1.msra.mxu0 0.0
        %622 = vmatprep.subr.mxu0 0.0
        %623 = vmatpush1.msra.mxu0 0.0
        %624 = vmatprep.subr.mxu0 0.0
        %625 = vmatpush1.msra.mxu0 0.0
        %626 = vmatprep.subr.mxu0 0.0
        %627 = vmatpush1.msra.mxu0 0.0
        %628 = vmatprep.subr.mxu0 0.0
        %629 = vmatpush1.msra.mxu0 0.0
        %630 = vmatprep.subr.mxu0 0.0
        %631 = vmatpush1.msra.mxu0 0.0
        %632 = vmatprep.subr.mxu0 0.0
        %633 = vmatpush1.msra.mxu0 0.0
        %634 = vmatprep.subr.mxu0 0.0
        %635 = vmatpush1.msra.mxu0 0.0
        %636 = vmatprep.subr.mxu0 0.0
        %637 = vmatpush1.msra.mxu0 0.0
        %638 = vmatprep.subr.mxu0 0.0
        %639 = vmatpush1.msra.mxu0 0.0
        %640 = vmatprep.subr.mxu0 0.0
        %641 = vmatpush1.msra.mxu0 0.0
        %642 = vmatprep.subr.mxu0 0.0
        %643 = vmatpush1.msra.mxu0 0.0
        %644 = vmatprep.subr.mxu0 0.0
        %645 = vmatpush1.msra.mxu0 0.0
        %646 = vmatprep.subr.mxu0 0.0
        %647 = vmatpush1.msra.mxu0 0.0
        %648 = vmatprep.subr.mxu0 0.0
        %649 = vmatpush1.msra.mxu0 0.0
        %650 = vmatprep.subr.mxu0 0.0
        %651 = vmatpush1.msra.mxu0 0.0
        %652 = vmatprep.subr.mxu0 0.0
        %653 = vmatpush1.msra.mxu0 0.0
        %654 = vmatprep.mubr.f32.mxu0 0.0
        %655 = vmatmul.mubr.f32.gmra.mrb[0].mxu0 %v573
        %v656 = vpop.f32.mrb[0].mxu0
        %v657 = vadd.f32 %v538, %v656
        %v658 = vpop.f32.mrb[0].mxu0
        %v659 = vadd.f32 %v540, %v658
        %660 = vmatprep.mubr.f32.mxu0 0.0
        %661 = vmatmul.mubr.f32.gmra.mrb[0].mxu0 %v576
        %v662 = vpop.f32.mrb[0].mxu0
        %v663 = vadd.f32 %v544, %v662
        %v664 = vpop.f32.mrb[0].mxu0
        %v665 = vadd.f32 %v546, %v664
        %666 = vmatprep.mubr.f32.mxu0 0.0
        %667 = vmatmul.mubr.f32.gmra.mrb[0].mxu0 %v579
        %v668 = vpop.f32.mrb[0].mxu0
        %v669 = vadd.f32 %v550, %v668
        %v670 = vpop.f32.mrb[0].mxu0
        %v671 = vadd.f32 %v552, %v670
        %672 = vmatprep.mubr.f32.mxu0 0.0
        %673 = vmatmul.mubr.f32.gmra.mrb[0].mxu0 %v582
        %v674 = vpop.f32.mrb[0].mxu0
        %v675 = vadd.f32 %v556, %v674
        %v676 = vpop.f32.mrb[0].mxu0
        %v677 = vadd.f32 %v558, %v676
        %678 = vmatprep.mubr.f32.mxu0 0.0
        %679 = vmatmul.mubr.f32.gmra.mrb[0].mxu0 %v585
        %v680 = vpop.f32.mrb[0].mxu0
        %v681 = vadd.f32 %v562, %v680
        %v682 = vpop.f32.mrb[0].mxu0
        %v683 = vadd.f32 %v564, %v682
        %684 = vmatprep.mubr.f32.mxu0 0.0
        %685 = vmatmul.mubr.f32.gmra.mrb[0].mxu0 %v588
        %v686 = vpop.f32.mrb[0].mxu0
        %v687 = vadd.f32 %v568, %v686
        %v688 = vpop.f32.mrb[0].mxu0
        %v689 = vadd.f32 %v570, %v688
        %690 = vdwg.mxu0
        %v691 = vld [vmem:[%s4] sm:$0xff]
        %v692 = vld [vmem:[%s4 + $0x8] sm:$0xff]
        %v693 = vld [vmem:[%s4 + $0x10] sm:$0xff]
        %v694 = vld [vmem:[%s4 + $0x18] sm:$0xff]
        %v695 = vld [vmem:[%s4 + $0x20] sm:$0xff]
        %v696 = vld [vmem:[%s4 + $0x28] sm:$0xff]
        %698 = vset.pattern.permute.xlu0 0
        %699 = vperm.xlu0 %698, %v691
        %v700 = vpop.permute.xlu0 %699
        %703 = vset.pattern.permute.xlu0 0
        %704 = vperm.xlu0 %703, %v692
        %v705 = vpop.permute.xlu0 %704
        %708 = vset.pattern.permute.xlu0 0
        %709 = vperm.xlu0 %708, %v693
        %v710 = vpop.permute.xlu0 %709
        %713 = vset.pattern.permute.xlu0 0
        %714 = vperm.xlu0 %713, %v694
        %v715 = vpop.permute.xlu0 %714
        %718 = vset.pattern.permute.xlu0 0
        %719 = vperm.xlu0 %718, %v695
        %v720 = vpop.permute.xlu0 %719
        %723 = vset.pattern.permute.xlu0 0
        %724 = vperm.xlu0 %723, %v696
        %v725 = vpop.permute.xlu0 %724
        %v727 = vadd.f32 %v657, %v700
        %v728 = vadd.f32 %v659, %v700
        %v729 = vadd.f32 %v663, %v705
        %v730 = vadd.f32 %v665, %v705
        %v731 = vadd.f32 %v669, %v710
        %v732 = vadd.f32 %v671, %v710
        %v733 = vadd.f32 %v675, %v715
        %v734 = vadd.f32 %v677, %v715
        %v735 = vadd.f32 %v681, %v720
        %v736 = vadd.f32 %v683, %v720
        %v737 = vadd.f32 %v687, %v725
        %v738 = vadd.f32 %v689, %v725
        %751 = vrot.lane.b32.xlu0 %v727, 24
        %v752 = vpop.permute.xlu0 %751
        %753 = vrot.lane.b32.xlu0 %v728, 24
        %v754 = vpop.permute.xlu0 %753
        %755 = vrot.lane.b32.xlu0 %v729, 24
        %v756 = vpop.permute.xlu0 %755
        %757 = vrot.lane.b32.xlu0 %v730, 24
        %v758 = vpop.permute.xlu0 %757
        %759 = vrot.lane.b32.xlu0 %v731, 24
        %v760 = vpop.permute.xlu0 %759
        %761 = vrot.lane.b32.xlu0 %v732, 24
        %v762 = vpop.permute.xlu0 %761
        %763 = vrot.lane.b32.xlu0 %v733, 24
        %v764 = vpop.permute.xlu0 %763
        %765 = vrot.lane.b32.xlu0 %v734, 24
        %v766 = vpop.permute.xlu0 %765
        %767 = vrot.lane.b32.xlu0 %v735, 24
        %v768 = vpop.permute.xlu0 %767
        %769 = vrot.lane.b32.xlu0 %v736, 24
        %v770 = vpop.permute.xlu0 %769
        %771 = vrot.lane.b32.xlu0 %v737, 24
        %v772 = vpop.permute.xlu0 %771
        %773 = vrot.lane.b32.xlu0 %v738, 24
        %v774 = vpop.permute.xlu0 %773
        %vm775 = vcmask 195584
        %v776 = vsel %vm775, %v752, %v754
        %v777 = vsel %vm775, %v756, %v758
        %v778 = vsel %vm775, %v760, %v762
        %v779 = vsel %vm775, %v764, %v766
        %v780 = vsel %vm775, %v768, %v770
        %v781 = vsel %vm775, %v772, %v774
        %v800 = vsel %vm775, 0.0, %v752
        %v801 = vsel %vm775, 0.0, %v756
        %v802 = vsel %vm775, 0.0, %v760
        %v803 = vsel %vm775, 0.0, %v764
        %v804 = vsel %vm775, 0.0, %v768
        %v805 = vsel %vm775, 0.0, %v772
        %v806 = vsel %vm775, %v754, 0.0
        %v807 = vsel %vm775, %v758, 0.0
        %v808 = vsel %vm775, %v762, 0.0
        %v809 = vsel %vm775, %v766, 0.0
        %v810 = vsel %vm775, %v770, 0.0
        %v811 = vsel %vm775, %v774, 0.0
        %v812 = vld [vmem:[%s7] ss:$2 sm:$0x3]
        %v814 = vlaneseq
        %v815 = vshrl.u32 %v814, 7
        %v816 = vsub.s32 0, %v815
        %v817 = vrot.slane %v812, %v816
        %v818 = vlaneseq
        %v819 = vshrl.u32 %v818, 7
        %v820 = vsub.s32 1, %v819
        %v821 = vrot.slane %v812, %v820
        %822 = vrot.lane.b32.xlu0 %v817, 7
        %v823 = vpop.permute.xlu0 %822
        %824 = vrot.lane.b32.xlu0 %v821, 7
        %v825 = vpop.permute.xlu0 %824
        %vm826 = vcmask 56320
        %v827 = vsel %vm826, %v823, %v825
        %v831 = vmul.f32 %v800, %v823
        %v832 = vmul.f32 %v776, %v827
        %v833 = vmul.f32 %v806, %v825
        %v834 = vmul.f32 %v801, %v823
        %v835 = vmul.f32 %v777, %v827
        %v836 = vmul.f32 %v807, %v825
        %v837 = vmul.f32 %v802, %v823
        %v838 = vmul.f32 %v778, %v827
        %v839 = vmul.f32 %v808, %v825
        %v840 = vmul.f32 %v803, %v823
        %v841 = vmul.f32 %v779, %v827
        %v842 = vmul.f32 %v809, %v825
        %v843 = vmul.f32 %v804, %v823
        %v844 = vmul.f32 %v780, %v827
        %v845 = vmul.f32 %v810, %v825
        %v846 = vmul.f32 %v805, %v823
        %v847 = vmul.f32 %v781, %v827
        %v848 = vmul.f32 %v811, %v825
        %v849 = vld [vmem:[%s5] sm:$0xff]
        %v850 = vld [vmem:[%s5 + $0x8] sm:$0xff]
        %v851 = vld [vmem:[%s5 + $0x10] sm:$0xff]
        %v852 = vld [vmem:[%s5 + $0x18] sm:$0xff]
        %v853 = vld [vmem:[%s5 + $0x20] sm:$0xff]
        %v854 = vld [vmem:[%s5 + $0x28] sm:$0xff]
        %856 = vset.pattern.permute.xlu0 0
        %857 = vperm.xlu0 %856, %v849
        %v858 = vpop.permute.xlu0 %857
        %861 = vset.pattern.permute.xlu0 0
        %862 = vperm.xlu0 %861, %v850
        %v863 = vpop.permute.xlu0 %862
        %866 = vset.pattern.permute.xlu0 0
        %867 = vperm.xlu0 %866, %v851
        %v868 = vpop.permute.xlu0 %867
        %871 = vset.pattern.permute.xlu0 0
        %872 = vperm.xlu0 %871, %v852
        %v873 = vpop.permute.xlu0 %872
        %876 = vset.pattern.permute.xlu0 0
        %877 = vperm.xlu0 %876, %v853
        %v878 = vpop.permute.xlu0 %877
        %881 = vset.pattern.permute.xlu0 0
        %882 = vperm.xlu0 %881, %v854
        %v883 = vpop.permute.xlu0 %882
        %v885 = vmul.f32 %v831, %v858
        %v886 = vmul.f32 %v832, %v858
        %v887 = vmul.f32 %v833, %v858
        %v888 = vmul.f32 %v834, %v863
        %v889 = vmul.f32 %v835, %v863
        %v890 = vmul.f32 %v836, %v863
        %v891 = vmul.f32 %v837, %v868
        %v892 = vmul.f32 %v838, %v868
        %v893 = vmul.f32 %v839, %v868
        %v894 = vmul.f32 %v840, %v873
        %v895 = vmul.f32 %v841, %v873
        %v896 = vmul.f32 %v842, %v873
        %v897 = vmul.f32 %v843, %v878
        %v898 = vmul.f32 %v844, %v878
        %v899 = vmul.f32 %v845, %v878
        %v900 = vmul.f32 %v846, %v883
        %v901 = vmul.f32 %v847, %v883
        %v902 = vmul.f32 %v848, %v883
        %v903 = vadd.f32 %v885, 0.0
        %v904 = vadd.f32 %v886, 0.0
        %v905 = vadd.f32 %v887, 0.0
        %v906 = vadd.f32 %v888, 0.0
        %v907 = vadd.f32 %v889, 0.0
        %v908 = vadd.f32 %v890, 0.0
        %v909 = vadd.f32 %v891, 0.0
        %v910 = vadd.f32 %v892, 0.0
        %v911 = vadd.f32 %v893, 0.0
        %v912 = vadd.f32 %v894, 0.0
        %v913 = vadd.f32 %v895, 0.0
        %v914 = vadd.f32 %v896, 0.0
        %v915 = vadd.f32 %v897, 0.0
        %v916 = vadd.f32 %v898, 0.0
        %v917 = vadd.f32 %v899, 0.0
        %v918 = vadd.f32 %v900, 0.0
        %v919 = vadd.f32 %v901, 0.0
        %v920 = vadd.f32 %v902, 0.0
        %921 = vset.pattern.permute.xlu0 1
        %922 = vperm.xlu0 %921, %v849
        %v923 = vpop.permute.xlu0 %922
        %925 = vset.pattern.permute.xlu0 1
        %926 = vperm.xlu0 %925, %v850
        %v927 = vpop.permute.xlu0 %926
        %929 = vset.pattern.permute.xlu0 1
        %930 = vperm.xlu0 %929, %v851
        %v931 = vpop.permute.xlu0 %930
        %933 = vset.pattern.permute.xlu0 1
        %934 = vperm.xlu0 %933, %v852
        %v935 = vpop.permute.xlu0 %934
        %937 = vset.pattern.permute.xlu0 1
        %938 = vperm.xlu0 %937, %v853
        %v939 = vpop.permute.xlu0 %938
        %941 = vset.pattern.permute.xlu0 1
        %942 = vperm.xlu0 %941, %v854
        %v943 = vpop.permute.xlu0 %942
        %v945 = vmul.f32 %v800, %v923
        %v946 = vmul.f32 %v776, %v923
        %v947 = vmul.f32 %v806, %v923
        %v948 = vmul.f32 %v801, %v927
        %v949 = vmul.f32 %v777, %v927
        %v950 = vmul.f32 %v807, %v927
        %v951 = vmul.f32 %v802, %v931
        %v952 = vmul.f32 %v778, %v931
        %v953 = vmul.f32 %v808, %v931
        %v954 = vmul.f32 %v803, %v935
        %v955 = vmul.f32 %v779, %v935
        %v956 = vmul.f32 %v809, %v935
        %v957 = vmul.f32 %v804, %v939
        %v958 = vmul.f32 %v780, %v939
        %v959 = vmul.f32 %v810, %v939
        %v960 = vmul.f32 %v805, %v943
        %v961 = vmul.f32 %v781, %v943
        %v962 = vmul.f32 %v811, %v943
        %981 = vrot.lane.b32.xlu0 %v945, 127
        %v982 = vpop.permute.xlu0 %981
        %983 = vrot.lane.b32.xlu0 %v946, 127
        %v984 = vpop.permute.xlu0 %983
        %985 = vrot.lane.b32.xlu0 %v947, 127
        %v986 = vpop.permute.xlu0 %985
        %987 = vrot.lane.b32.xlu0 %v948, 127
        %v988 = vpop.permute.xlu0 %987
        %989 = vrot.lane.b32.xlu0 %v949, 127
        %v990 = vpop.permute.xlu0 %989
        %991 = vrot.lane.b32.xlu0 %v950, 127
        %v992 = vpop.permute.xlu0 %991
        %993 = vrot.lane.b32.xlu0 %v951, 127
        %v994 = vpop.permute.xlu0 %993
        %995 = vrot.lane.b32.xlu0 %v952, 127
        %v996 = vpop.permute.xlu0 %995
        %997 = vrot.lane.b32.xlu0 %v953, 127
        %v998 = vpop.permute.xlu0 %997
        %999 = vrot.lane.b32.xlu0 %v954, 127
        %v1000 = vpop.permute.xlu0 %999
        %1001 = vrot.lane.b32.xlu0 %v955, 127
        %v1002 = vpop.permute.xlu0 %1001
        %1003 = vrot.lane.b32.xlu0 %v956, 127
        %v1004 = vpop.permute.xlu0 %1003
        %1005 = vrot.lane.b32.xlu0 %v957, 127
        %v1006 = vpop.permute.xlu0 %1005
        %1007 = vrot.lane.b32.xlu0 %v958, 127
        %v1008 = vpop.permute.xlu0 %1007
        %1009 = vrot.lane.b32.xlu0 %v959, 127
        %v1010 = vpop.permute.xlu0 %1009
        %1011 = vrot.lane.b32.xlu0 %v960, 127
        %v1012 = vpop.permute.xlu0 %1011
        %1013 = vrot.lane.b32.xlu0 %v961, 127
        %v1014 = vpop.permute.xlu0 %1013
        %1015 = vrot.lane.b32.xlu0 %v962, 127
        %v1016 = vpop.permute.xlu0 %1015
        %vm1017 = vcmask 1039360
        %v1018 = vsel %vm1017, %v982, %v984
        %v1019 = vsel %vm1017, %v984, %v986
        %v1020 = vsel %vm1017, %v988, %v990
        %v1021 = vsel %vm1017, %v990, %v992
        %v1022 = vsel %vm1017, %v994, %v996
        %v1023 = vsel %vm1017, %v996, %v998
        %v1024 = vsel %vm1017, %v1000, %v1002
        %v1025 = vsel %vm1017, %v1002, %v1004
        %v1026 = vsel %vm1017, %v1006, %v1008
        %v1027 = vsel %vm1017, %v1008, %v1010
        %v1028 = vsel %vm1017, %v1012, %v1014
        %v1029 = vsel %vm1017, %v1014, %v1016
        %v1048 = vadd.f32 %v903, %v1018
        %v1049 = vadd.f32 %v904, %v1019
        %v1050 = vadd.f32 %v905, %v986
        %v1051 = vadd.f32 %v906, %v1020
        %v1052 = vadd.f32 %v907, %v1021
        %v1053 = vadd.f32 %v908, %v992
        %v1054 = vadd.f32 %v909, %v1022
        %v1055 = vadd.f32 %v910, %v1023
        %v1056 = vadd.f32 %v911, %v998
        %v1057 = vadd.f32 %v912, %v1024
        %v1058 = vadd.f32 %v913, %v1025
        %v1059 = vadd.f32 %v914, %v1004
        %v1060 = vadd.f32 %v915, %v1026
        %v1061 = vadd.f32 %v916, %v1027
        %v1062 = vadd.f32 %v917, %v1010
        %v1063 = vadd.f32 %v918, %v1028
        %v1064 = vadd.f32 %v919, %v1029
        %v1065 = vadd.f32 %v920, %v1016
        %s1066 = scalar_lea.vmem %s7, 1
        %v1067 = vld [vmem:[%s1066] ss:$2 sm:$0x3]
        %v1069 = vlaneseq
        %v1070 = vshrl.u32 %v1069, 7
        %v1071 = vsub.s32 0, %v1070
        %v1072 = vrot.slane %v1067, %v1071
        %v1073 = vlaneseq
        %v1074 = vshrl.u32 %v1073, 7
        %v1075 = vsub.s32 1, %v1074
        %v1076 = vrot.slane %v1067, %v1075
        %1077 = vrot.lane.b32.xlu0 %v1072, 9
        %v1078 = vpop.permute.xlu0 %1077
        %1079 = vrot.lane.b32.xlu0 %v1076, 9
        %v1080 = vpop.permute.xlu0 %1079
        %vm1081 = vcmask 72704
        %v1082 = vsel %vm1081, %v1078, %v1080
        %v1086 = vmul.f32 %v800, %v1078
        %v1087 = vmul.f32 %v776, %v1082
        %v1088 = vmul.f32 %v806, %v1080
        %v1089 = vmul.f32 %v801, %v1078
        %v1090 = vmul.f32 %v777, %v1082
        %v1091 = vmul.f32 %v807, %v1080
        %v1092 = vmul.f32 %v802, %v1078
        %v1093 = vmul.f32 %v778, %v1082
        %v1094 = vmul.f32 %v808, %v1080
        %v1095 = vmul.f32 %v803, %v1078
        %v1096 = vmul.f32 %v779, %v1082
        %v1097 = vmul.f32 %v809, %v1080
        %v1098 = vmul.f32 %v804, %v1078
        %v1099 = vmul.f32 %v780, %v1082
        %v1100 = vmul.f32 %v810, %v1080
        %v1101 = vmul.f32 %v805, %v1078
        %v1102 = vmul.f32 %v781, %v1082
        %v1103 = vmul.f32 %v811, %v1080
        %1104 = vset.pattern.permute.xlu0 2
        %1105 = vperm.xlu0 %1104, %v849
        %v1106 = vpop.permute.xlu0 %1105
        %1108 = vset.pattern.permute.xlu0 2
        %1109 = vperm.xlu0 %1108, %v850
        %v1110 = vpop.permute.xlu0 %1109
        %1112 = vset.pattern.permute.xlu0 2
        %1113 = vperm.xlu0 %1112, %v851
        %v1114 = vpop.permute.xlu0 %1113
        %1116 = vset.pattern.permute.xlu0 2
        %1117 = vperm.xlu0 %1116, %v852
        %v1118 = vpop.permute.xlu0 %1117
        %1120 = vset.pattern.permute.xlu0 2
        %1121 = vperm.xlu0 %1120, %v853
        %v1122 = vpop.permute.xlu0 %1121
        %1124 = vset.pattern.permute.xlu0 2
        %1125 = vperm.xlu0 %1124, %v854
        %v1126 = vpop.permute.xlu0 %1125
        %v1128 = vmul.f32 %v1086, %v1106
        %v1129 = vmul.f32 %v1087, %v1106
        %v1130 = vmul.f32 %v1088, %v1106
        %v1131 = vmul.f32 %v1089, %v1110
        %v1132 = vmul.f32 %v1090, %v1110
        %v1133 = vmul.f32 %v1091, %v1110
        %v1134 = vmul.f32 %v1092, %v1114
        %v1135 = vmul.f32 %v1093, %v1114
        %v1136 = vmul.f32 %v1094, %v1114
        %v1137 = vmul.f32 %v1095, %v1118
        %v1138 = vmul.f32 %v1096, %v1118
        %v1139 = vmul.f32 %v1097, %v1118
        %v1140 = vmul.f32 %v1098, %v1122
        %v1141 = vmul.f32 %v1099, %v1122
        %v1142 = vmul.f32 %v1100, %v1122
        %v1143 = vmul.f32 %v1101, %v1126
        %v1144 = vmul.f32 %v1102, %v1126
        %v1145 = vmul.f32 %v1103, %v1126
        %1164 = vrot.lane.b32.xlu0 %v1128, 126
        %v1165 = vpop.permute.xlu0 %1164
        %1166 = vrot.lane.b32.xlu0 %v1129, 126
        %v1167 = vpop.permute.xlu0 %1166
        %1168 = vrot.lane.b32.xlu0 %v1130, 126
        %v1169 = vpop.permute.xlu0 %1168
        %1170 = vrot.lane.b32.xlu0 %v1131, 126
        %v1171 = vpop.permute.xlu0 %1170
        %1172 = vrot.lane.b32.xlu0 %v1132, 126
        %v1173 = vpop.permute.xlu0 %1172
        %1174 = vrot.lane.b32.xlu0 %v1133, 126
        %v1175 = vpop.permute.xlu0 %1174
        %1176 = vrot.lane.b32.xlu0 %v1134, 126
        %v1177 = vpop.permute.xlu0 %1176
        %1178 = vrot.lane.b32.xlu0 %v1135, 126
        %v1179 = vpop.permute.xlu0 %1178
        %1180 = vrot.lane.b32.xlu0 %v1136, 126
        %v1181 = vpop.permute.xlu0 %1180
        %1182 = vrot.lane.b32.xlu0 %v1137, 126
        %v1183 = vpop.permute.xlu0 %1182
        %1184 = vrot.lane.b32.xlu0 %v1138, 126
        %v1185 = vpop.permute.xlu0 %1184
        %1186 = vrot.lane.b32.xlu0 %v1139, 126
        %v1187 = vpop.permute.xlu0 %1186
        %1188 = vrot.lane.b32.xlu0 %v1140, 126
        %v1189 = vpop.permute.xlu0 %1188
        %1190 = vrot.lane.b32.xlu0 %v1141, 126
        %v1191 = vpop.permute.xlu0 %1190
        %1192 = vrot.lane.b32.xlu0 %v1142, 126
        %v1193 = vpop.permute.xlu0 %1192
        %1194 = vrot.lane.b32.xlu0 %v1143, 126
        %v1195 = vpop.permute.xlu0 %1194
        %1196 = vrot.lane.b32.xlu0 %v1144, 126
        %v1197 = vpop.permute.xlu0 %1196
        %1198 = vrot.lane.b32.xlu0 %v1145, 126
        %v1199 = vpop.permute.xlu0 %1198
        %vm1200 = vcmask 1031168
        %v1201 = vsel %vm1200, %v1165, %v1167
        %v1202 = vsel %vm1200, %v1167, %v1169
        %v1203 = vsel %vm1200, %v1171, %v1173
        %v1204 = vsel %vm1200, %v1173, %v1175
        %v1205 = vsel %vm1200, %v1177, %v1179
        %v1206 = vsel %vm1200, %v1179, %v1181
        %v1207 = vsel %vm1200, %v1183, %v1185
        %v1208 = vsel %vm1200, %v1185, %v1187
        %v1209 = vsel %vm1200, %v1189, %v1191
        %v1210 = vsel %vm1200, %v1191, %v1193
        %v1211 = vsel %vm1200, %v1195, %v1197
        %v1212 = vsel %vm1200, %v1197, %v1199
        %v1231 = vadd.f32 %v1048, %v1201
        %v1232 = vadd.f32 %v1049, %v1202
        %v1233 = vadd.f32 %v1050, %v1169
        %v1234 = vadd.f32 %v1051, %v1203
        %v1235 = vadd.f32 %v1052, %v1204
        %v1236 = vadd.f32 %v1053, %v1175
        %v1237 = vadd.f32 %v1054, %v1205
        %v1238 = vadd.f32 %v1055, %v1206
        %v1239 = vadd.f32 %v1056, %v1181
        %v1240 = vadd.f32 %v1057, %v1207
        %v1241 = vadd.f32 %v1058, %v1208
        %v1242 = vadd.f32 %v1059, %v1187
        %v1243 = vadd.f32 %v1060, %v1209
        %v1244 = vadd.f32 %v1061, %v1210
        %v1245 = vadd.f32 %v1062, %v1193
        %v1246 = vadd.f32 %v1063, %v1211
        %v1247 = vadd.f32 %v1064, %v1212
        %v1248 = vadd.f32 %v1065, %v1199
        %1249 = vrot.lane.b32.xlu0 %v817, 23
        %v1250 = vpop.permute.xlu0 %1249
        %1251 = vrot.lane.b32.xlu0 %v821, 23
        %v1252 = vpop.permute.xlu0 %1251
        %vm1253 = vcmask 187392
        %v1254 = vsel %vm1253, %v1250, %v1252
        %v1258 = vmul.f32 %v800, %v1250
        %v1259 = vmul.f32 %v776, %v1254
        %v1260 = vmul.f32 %v806, %v1252
        %v1261 = vmul.f32 %v801, %v1250
        %v1262 = vmul.f32 %v777, %v1254
        %v1263 = vmul.f32 %v807, %v1252
        %v1264 = vmul.f32 %v802, %v1250
        %v1265 = vmul.f32 %v778, %v1254
        %v1266 = vmul.f32 %v808, %v1252
        %v1267 = vmul.f32 %v803, %v1250
        %v1268 = vmul.f32 %v779, %v1254
        %v1269 = vmul.f32 %v809, %v1252
        %v1270 = vmul.f32 %v804, %v1250
        %v1271 = vmul.f32 %v780, %v1254
        %v1272 = vmul.f32 %v810, %v1252
        %v1273 = vmul.f32 %v805, %v1250
        %v1274 = vmul.f32 %v781, %v1254
        %v1275 = vmul.f32 %v811, %v1252
        %1276 = vset.pattern.permute.xlu0 3
        %1277 = vperm.xlu0 %1276, %v849
        %v1278 = vpop.permute.xlu0 %1277
        %1280 = vset.pattern.permute.xlu0 3
        %1281 = vperm.xlu0 %1280, %v850
        %v1282 = vpop.permute.xlu0 %1281
        %1284 = vset.pattern.permute.xlu0 3
        %1285 = vperm.xlu0 %1284, %v851
        %v1286 = vpop.permute.xlu0 %1285
        %1288 = vset.pattern.permute.xlu0 3
        %1289 = vperm.xlu0 %1288, %v852
        %v1290 = vpop.permute.xlu0 %1289
        %1292 = vset.pattern.permute.xlu0 3
        %1293 = vperm.xlu0 %1292, %v853
        %v1294 = vpop.permute.xlu0 %1293
        %1296 = vset.pattern.permute.xlu0 3
        %1297 = vperm.xlu0 %1296, %v854
        %v1298 = vpop.permute.xlu0 %1297
        %v1300 = vmul.f32 %v1258, %v1278
        %v1301 = vmul.f32 %v1259, %v1278
        %v1302 = vmul.f32 %v1260, %v1278
        %v1303 = vmul.f32 %v1261, %v1282
        %v1304 = vmul.f32 %v1262, %v1282
        %v1305 = vmul.f32 %v1263, %v1282
        %v1306 = vmul.f32 %v1264, %v1286
        %v1307 = vmul.f32 %v1265, %v1286
        %v1308 = vmul.f32 %v1266, %v1286
        %v1309 = vmul.f32 %v1267, %v1290
        %v1310 = vmul.f32 %v1268, %v1290
        %v1311 = vmul.f32 %v1269, %v1290
        %v1312 = vmul.f32 %v1270, %v1294
        %v1313 = vmul.f32 %v1271, %v1294
        %v1314 = vmul.f32 %v1272, %v1294
        %v1315 = vmul.f32 %v1273, %v1298
        %v1316 = vmul.f32 %v1274, %v1298
        %v1317 = vmul.f32 %v1275, %v1298
        %1336 = vrot.lane.b32.xlu0 %v1300, 112
        %v1337 = vpop.permute.xlu0 %1336
        %1338 = vrot.lane.b32.xlu0 %v1301, 112
        %v1339 = vpop.permute.xlu0 %1338
        %1340 = vrot.lane.b32.xlu0 %v1302, 112
        %v1341 = vpop.permute.xlu0 %1340
        %1342 = vrot.lane.b32.xlu0 %v1303, 112
        %v1343 = vpop.permute.xlu0 %1342
        %1344 = vrot.lane.b32.xlu0 %v1304, 112
        %v1345 = vpop.permute.xlu0 %1344
        %1346 = vrot.lane.b32.xlu0 %v1305, 112
        %v1347 = vpop.permute.xlu0 %1346
        %1348 = vrot.lane.b32.xlu0 %v1306, 112
        %v1349 = vpop.permute.xlu0 %1348
        %1350 = vrot.lane.b32.xlu0 %v1307, 112
        %v1351 = vpop.permute.xlu0 %1350
        %1352 = vrot.lane.b32.xlu0 %v1308, 112
        %v1353 = vpop.permute.xlu0 %1352
        %1354 = vrot.lane.b32.xlu0 %v1309, 112
        %v1355 = vpop.permute.xlu0 %1354
        %1356 = vrot.lane.b32.xlu0 %v1310, 112
        %v1357 = vpop.permute.xlu0 %1356
        %1358 = vrot.lane.b32.xlu0 %v1311, 112
        %v1359 = vpop.permute.xlu0 %1358
        %1360 = vrot.lane.b32.xlu0 %v1312, 112
        %v1361 = vpop.permute.xlu0 %1360
        %1362 = vrot.lane.b32.xlu0 %v1313, 112
        %v1363 = vpop.permute.xlu0 %1362
        %1364 = vrot.lane.b32.xlu0 %v1314, 112
        %v1365 = vpop.permute.xlu0 %1364
        %1366 = vrot.lane.b32.xlu0 %v1315, 112
        %v1367 = vpop.permute.xlu0 %1366
        %1368 = vrot.lane.b32.xlu0 %v1316, 112
        %v1369 = vpop.permute.xlu0 %1368
        %1370 = vrot.lane.b32.xlu0 %v1317, 112
        %v1371 = vpop.permute.xlu0 %1370
        %vm1372 = vcmask 916480
        %v1373 = vsel %vm1372, %v1337, %v1339
        %v1374 = vsel %vm1372, %v1339, %v1341
        %v1375 = vsel %vm1372, %v1343, %v1345
        %v1376 = vsel %vm1372, %v1345, %v1347
        %v1377 = vsel %vm1372, %v1349, %v1351
        %v1378 = vsel %vm1372, %v1351, %v1353
        %v1379 = vsel %vm1372, %v1355, %v1357
        %v1380 = vsel %vm1372, %v1357, %v1359
        %v1381 = vsel %vm1372, %v1361, %v1363
        %v1382 = vsel %vm1372, %v1363, %v1365
        %v1383 = vsel %vm1372, %v1367, %v1369
        %v1384 = vsel %vm1372, %v1369, %v1371
        %v1403 = vadd.f32 %v1231, %v1373
        %v1404 = vadd.f32 %v1232, %v1374
        %v1405 = vadd.f32 %v1233, %v1341
        %v1406 = vadd.f32 %v1234, %v1375
        %v1407 = vadd.f32 %v1235, %v1376
        %v1408 = vadd.f32 %v1236, %v1347
        %v1409 = vadd.f32 %v1237, %v1377
        %v1410 = vadd.f32 %v1238, %v1378
        %v1411 = vadd.f32 %v1239, %v1353
        %v1412 = vadd.f32 %v1240, %v1379
        %v1413 = vadd.f32 %v1241, %v1380
        %v1414 = vadd.f32 %v1242, %v1359
        %v1415 = vadd.f32 %v1243, %v1381
        %v1416 = vadd.f32 %v1244, %v1382
        %v1417 = vadd.f32 %v1245, %v1365
        %v1418 = vadd.f32 %v1246, %v1383
        %v1419 = vadd.f32 %v1247, %v1384
        %v1420 = vadd.f32 %v1248, %v1371
        %1421 = vset.pattern.permute.xlu0 4
        %1422 = vperm.xlu0 %1421, %v849
        %v1423 = vpop.permute.xlu0 %1422
        %1425 = vset.pattern.permute.xlu0 4
        %1426 = vperm.xlu0 %1425, %v850
        %v1427 = vpop.permute.xlu0 %1426
        %1429 = vset.pattern.permute.xlu0 4
        %1430 = vperm.xlu0 %1429, %v851
        %v1431 = vpop.permute.xlu0 %1430
        %1433 = vset.pattern.permute.xlu0 4
        %1434 = vperm.xlu0 %1433, %v852
        %v1435 = vpop.permute.xlu0 %1434
        %1437 = vset.pattern.permute.xlu0 4
        %1438 = vperm.xlu0 %1437, %v853
        %v1439 = vpop.permute.xlu0 %1438
        %1441 = vset.pattern.permute.xlu0 4
        %1442 = vperm.xlu0 %1441, %v854
        %v1443 = vpop.permute.xlu0 %1442
        %v1445 = vmul.f32 %v800, %v1423
        %v1446 = vmul.f32 %v776, %v1423
        %v1447 = vmul.f32 %v806, %v1423
        %v1448 = vmul.f32 %v801, %v1427
        %v1449 = vmul.f32 %v777, %v1427
        %v1450 = vmul.f32 %v807, %v1427
        %v1451 = vmul.f32 %v802, %v1431
        %v1452 = vmul.f32 %v778, %v1431
        %v1453 = vmul.f32 %v808, %v1431
        %v1454 = vmul.f32 %v803, %v1435
        %v1455 = vmul.f32 %v779, %v1435
        %v1456 = vmul.f32 %v809, %v1435
        %v1457 = vmul.f32 %v804, %v1439
        %v1458 = vmul.f32 %v780, %v1439
        %v1459 = vmul.f32 %v810, %v1439
        %v1460 = vmul.f32 %v805, %v1443
        %v1461 = vmul.f32 %v781, %v1443
        %v1462 = vmul.f32 %v811, %v1443
        %1481 = vrot.lane.b32.xlu0 %v1445, 111
        %v1482 = vpop.permute.xlu0 %1481
        %1483 = vrot.lane.b32.xlu0 %v1446, 111
        %v1484 = vpop.permute.xlu0 %1483
        %1485 = vrot.lane.b32.xlu0 %v1447, 111
        %v1486 = vpop.permute.xlu0 %1485
        %1487 = vrot.lane.b32.xlu0 %v1448, 111
        %v1488 = vpop.permute.xlu0 %1487
        %1489 = vrot.lane.b32.xlu0 %v1449, 111
        %v1490 = vpop.permute.xlu0 %1489
        %1491 = vrot.lane.b32.xlu0 %v1450, 111
        %v1492 = vpop.permute.xlu0 %1491
        %1493 = vrot.lane.b32.xlu0 %v1451, 111
        %v1494 = vpop.permute.xlu0 %1493
        %1495 = vrot.lane.b32.xlu0 %v1452, 111
        %v1496 = vpop.permute.xlu0 %1495
        %1497 = vrot.lane.b32.xlu0 %v1453, 111
        %v1498 = vpop.permute.xlu0 %1497
        %1499 = vrot.lane.b32.xlu0 %v1454, 111
        %v1500 = vpop.permute.xlu0 %1499
        %1501 = vrot.lane.b32.xlu0 %v1455, 111
        %v1502 = vpop.permute.xlu0 %1501
        %1503 = vrot.lane.b32.xlu0 %v1456, 111
        %v1504 = vpop.permute.xlu0 %1503
        %1505 = vrot.lane.b32.xlu0 %v1457, 111
        %v1506 = vpop.permute.xlu0 %1505
        %1507 = vrot.lane.b32.xlu0 %v1458, 111
        %v1508 = vpop.permute.xlu0 %1507
        %1509 = vrot.lane.b32.xlu0 %v1459, 111
        %v1510 = vpop.permute.xlu0 %1509
        %1511 = vrot.lane.b32.xlu0 %v1460, 111
        %v1512 = vpop.permute.xlu0 %1511
        %1513 = vrot.lane.b32.xlu0 %v1461, 111
        %v1514 = vpop.permute.xlu0 %1513
        %1515 = vrot.lane.b32.xlu0 %v1462, 111
        %v1516 = vpop.permute.xlu0 %1515
        %vm1517 = vcmask 908288
        %v1518 = vsel %vm1517, %v1482, %v1484
        %v1519 = vsel %vm1517, %v1484, %v1486
        %v1520 = vsel %vm1517, %v1488, %v1490
        %v1521 = vsel %vm1517, %v1490, %v1492
        %v1522 = vsel %vm1517, %v1494, %v1496
        %v1523 = vsel %vm1517, %v1496, %v1498
        %v1524 = vsel %vm1517, %v1500, %v1502
        %v1525 = vsel %vm1517, %v1502, %v1504
        %v1526 = vsel %vm1517, %v1506, %v1508
        %v1527 = vsel %vm1517, %v1508, %v1510
        %v1528 = vsel %vm1517, %v1512, %v1514
        %v1529 = vsel %vm1517, %v1514, %v1516
        %v1548 = vadd.f32 %v1403, %v1518
        %v1549 = vadd.f32 %v1404, %v1519
        %v1550 = vadd.f32 %v1405, %v1486
        %v1551 = vadd.f32 %v1406, %v1520
        %v1552 = vadd.f32 %v1407, %v1521
        %v1553 = vadd.f32 %v1408, %v1492
        %v1554 = vadd.f32 %v1409, %v1522
        %v1555 = vadd.f32 %v1410, %v1523
        %v1556 = vadd.f32 %v1411, %v1498
        %v1557 = vadd.f32 %v1412, %v1524
        %v1558 = vadd.f32 %v1413, %v1525
        %v1559 = vadd.f32 %v1414, %v1504
        %v1560 = vadd.f32 %v1415, %v1526
        %v1561 = vadd.f32 %v1416, %v1527
        %v1562 = vadd.f32 %v1417, %v1510
        %v1563 = vadd.f32 %v1418, %v1528
        %v1564 = vadd.f32 %v1419, %v1529
        %v1565 = vadd.f32 %v1420, %v1516
        %1566 = vrot.lane.b32.xlu0 %v1072, 25
        %v1567 = vpop.permute.xlu0 %1566
        %1568 = vrot.lane.b32.xlu0 %v1076, 25
        %v1569 = vpop.permute.xlu0 %1568
        %vm1570 = vcmask 203776
        %v1571 = vsel %vm1570, %v1567, %v1569
        %v1575 = vmul.f32 %v800, %v1567
        %v1576 = vmul.f32 %v776, %v1571
        %v1577 = vmul.f32 %v806, %v1569
        %v1578 = vmul.f32 %v801, %v1567
        %v1579 = vmul.f32 %v777, %v1571
        %v1580 = vmul.f32 %v807, %v1569
        %v1581 = vmul.f32 %v802, %v1567
        %v1582 = vmul.f32 %v778, %v1571
        %v1583 = vmul.f32 %v808, %v1569
        %v1584 = vmul.f32 %v803, %v1567
        %v1585 = vmul.f32 %v779, %v1571
        %v1586 = vmul.f32 %v809, %v1569
        %v1587 = vmul.f32 %v804, %v1567
        %v1588 = vmul.f32 %v780, %v1571
        %v1589 = vmul.f32 %v810, %v1569
        %v1590 = vmul.f32 %v805, %v1567
        %v1591 = vmul.f32 %v781, %v1571
        %v1592 = vmul.f32 %v811, %v1569
        %1593 = vset.pattern.permute.xlu0 5
        %1594 = vperm.xlu0 %1593, %v849
        %v1595 = vpop.permute.xlu0 %1594
        %1597 = vset.pattern.permute.xlu0 5
        %1598 = vperm.xlu0 %1597, %v850
        %v1599 = vpop.permute.xlu0 %1598
        %1601 = vset.pattern.permute.xlu0 5
        %1602 = vperm.xlu0 %1601, %v851
        %v1603 = vpop.permute.xlu0 %1602
        %1605 = vset.pattern.permute.xlu0 5
        %1606 = vperm.xlu0 %1605, %v852
        %v1607 = vpop.permute.xlu0 %1606
        %1609 = vset.pattern.permute.xlu0 5
        %1610 = vperm.xlu0 %1609, %v853
        %v1611 = vpop.permute.xlu0 %1610
        %1613 = vset.pattern.permute.xlu0 5
        %1614 = vperm.xlu0 %1613, %v854
        %v1615 = vpop.permute.xlu0 %1614
        %v1617 = vmul.f32 %v1575, %v1595
        %v1618 = vmul.f32 %v1576, %v1595
        %v1619 = vmul.f32 %v1577, %v1595
        %v1620 = vmul.f32 %v1578, %v1599
        %v1621 = vmul.f32 %v1579, %v1599
        %v1622 = vmul.f32 %v1580, %v1599
        %v1623 = vmul.f32 %v1581, %v1603
        %v1624 = vmul.f32 %v1582, %v1603
        %v1625 = vmul.f32 %v1583, %v1603
        %v1626 = vmul.f32 %v1584, %v1607
        %v1627 = vmul.f32 %v1585, %v1607
        %v1628 = vmul.f32 %v1586, %v1607
        %v1629 = vmul.f32 %v1587, %v1611
        %v1630 = vmul.f32 %v1588, %v1611
        %v1631 = vmul.f32 %v1589, %v1611
        %v1632 = vmul.f32 %v1590, %v1615
        %v1633 = vmul.f32 %v1591, %v1615
        %v1634 = vmul.f32 %v1592, %v1615
        %1653 = vrot.lane.b32.xlu0 %v1617, 110
        %v1654 = vpop.permute.xlu0 %1653
        %1655 = vrot.lane.b32.xlu0 %v1618, 110
        %v1656 = vpop.permute.xlu0 %1655
        %1657 = vrot.lane.b32.xlu0 %v1619, 110
        %v1658 = vpop.permute.xlu0 %1657
        %1659 = vrot.lane.b32.xlu0 %v1620, 110
        %v1660 = vpop.permute.xlu0 %1659
        %1661 = vrot.lane.b32.xlu0 %v1621, 110
        %v1662 = vpop.permute.xlu0 %1661
        %1663 = vrot.lane.b32.xlu0 %v1622, 110
        %v1664 = vpop.permute.xlu0 %1663
        %1665 = vrot.lane.b32.xlu0 %v1623, 110
        %v1666 = vpop.permute.xlu0 %1665
        %1667 = vrot.lane.b32.xlu0 %v1624, 110
        %v1668 = vpop.permute.xlu0 %1667
        %1669 = vrot.lane.b32.xlu0 %v1625, 110
        %v1670 = vpop.permute.xlu0 %1669
        %1671 = vrot.lane.b32.xlu0 %v1626, 110
        %v1672 = vpop.permute.xlu0 %1671
        %1673 = vrot.lane.b32.xlu0 %v1627, 110
        %v1674 = vpop.permute.xlu0 %1673
        %1675 = vrot.lane.b32.xlu0 %v1628, 110
        %v1676 = vpop.permute.xlu0 %1675
        %1677 = vrot.lane.b32.xlu0 %v1629, 110
        %v1678 = vpop.permute.xlu0 %1677
        %1679 = vrot.lane.b32.xlu0 %v1630, 110
        %v1680 = vpop.permute.xlu0 %1679
        %1681 = vrot.lane.b32.xlu0 %v1631, 110
        %v1682 = vpop.permute.xlu0 %1681
        %1683 = vrot.lane.b32.xlu0 %v1632, 110
        %v1684 = vpop.permute.xlu0 %1683
        %1685 = vrot.lane.b32.xlu0 %v1633, 110
        %v1686 = vpop.permute.xlu0 %1685
        %1687 = vrot.lane.b32.xlu0 %v1634, 110
        %v1688 = vpop.permute.xlu0 %1687
        %vm1689 = vcmask 900096
        %v1690 = vsel %vm1689, %v1654, %v1656
        %v1691 = vsel %vm1689, %v1656, %v1658
        %v1692 = vsel %vm1689, %v1660, %v1662
        %v1693 = vsel %vm1689, %v1662, %v1664
        %v1694 = vsel %vm1689, %v1666, %v1668
        %v1695 = vsel %vm1689, %v1668, %v1670
        %v1696 = vsel %vm1689, %v1672, %v1674
        %v1697 = vsel %vm1689, %v1674, %v1676
        %v1698 = vsel %vm1689, %v1678, %v1680
        %v1699 = vsel %vm1689, %v1680, %v1682
        %v1700 = vsel %vm1689, %v1684, %v1686
        %v1701 = vsel %vm1689, %v1686, %v1688
        %v1720 = vadd.f32 %v1548, %v1690
        %v1721 = vadd.f32 %v1549, %v1691
        %v1722 = vadd.f32 %v1550, %v1658
        %v1723 = vadd.f32 %v1551, %v1692
        %v1724 = vadd.f32 %v1552, %v1693
        %v1725 = vadd.f32 %v1553, %v1664
        %v1726 = vadd.f32 %v1554, %v1694
        %v1727 = vadd.f32 %v1555, %v1695
        %v1728 = vadd.f32 %v1556, %v1670
        %v1729 = vadd.f32 %v1557, %v1696
        %v1730 = vadd.f32 %v1558, %v1697
        %v1731 = vadd.f32 %v1559, %v1676
        %v1732 = vadd.f32 %v1560, %v1698
        %v1733 = vadd.f32 %v1561, %v1699
        %v1734 = vadd.f32 %v1562, %v1682
        %v1735 = vadd.f32 %v1563, %v1700
        %v1736 = vadd.f32 %v1564, %v1701
        %v1737 = vadd.f32 %v1565, %v1688
        %1738 = vrot.lane.b32.xlu0 %v817, 39
        %v1739 = vpop.permute.xlu0 %1738
        %1740 = vrot.lane.b32.xlu0 %v821, 39
        %v1741 = vpop.permute.xlu0 %1740
        %vm1742 = vcmask 318464
        %v1743 = vsel %vm1742, %v1739, %v1741
        %v1747 = vmul.f32 %v800, %v1739
        %v1748 = vmul.f32 %v776, %v1743
        %v1749 = vmul.f32 %v806, %v1741
        %v1750 = vmul.f32 %v801, %v1739
        %v1751 = vmul.f32 %v777, %v1743
        %v1752 = vmul.f32 %v807, %v1741
        %v1753 = vmul.f32 %v802, %v1739
        %v1754 = vmul.f32 %v778, %v1743
        %v1755 = vmul.f32 %v808, %v1741
        %v1756 = vmul.f32 %v803, %v1739
        %v1757 = vmul.f32 %v779, %v1743
        %v1758 = vmul.f32 %v809, %v1741
        %v1759 = vmul.f32 %v804, %v1739
        %v1760 = vmul.f32 %v780, %v1743
        %v1761 = vmul.f32 %v810, %v1741
        %v1762 = vmul.f32 %v805, %v1739
        %v1763 = vmul.f32 %v781, %v1743
        %v1764 = vmul.f32 %v811, %v1741
        %1765 = vset.pattern.permute.xlu0 6
        %1766 = vperm.xlu0 %1765, %v849
        %v1767 = vpop.permute.xlu0 %1766
        %1769 = vset.pattern.permute.xlu0 6
        %1770 = vperm.xlu0 %1769, %v850
        %v1771 = vpop.permute.xlu0 %1770
        %1773 = vset.pattern.permute.xlu0 6
        %1774 = vperm.xlu0 %1773, %v851
        %v1775 = vpop.permute.xlu0 %1774
        %1777 = vset.pattern.permute.xlu0 6
        %1778 = vperm.xlu0 %1777, %v852
        %v1779 = vpop.permute.xlu0 %1778
        %1781 = vset.pattern.permute.xlu0 6
        %1782 = vperm.xlu0 %1781, %v853
        %v1783 = vpop.permute.xlu0 %1782
        %1785 = vset.pattern.permute.xlu0 6
        %1786 = vperm.xlu0 %1785, %v854
        %v1787 = vpop.permute.xlu0 %1786
        %v1789 = vmul.f32 %v1747, %v1767
        %v1790 = vmul.f32 %v1748, %v1767
        %v1791 = vmul.f32 %v1749, %v1767
        %v1792 = vmul.f32 %v1750, %v1771
        %v1793 = vmul.f32 %v1751, %v1771
        %v1794 = vmul.f32 %v1752, %v1771
        %v1795 = vmul.f32 %v1753, %v1775
        %v1796 = vmul.f32 %v1754, %v1775
        %v1797 = vmul.f32 %v1755, %v1775
        %v1798 = vmul.f32 %v1756, %v1779
        %v1799 = vmul.f32 %v1757, %v1779
        %v1800 = vmul.f32 %v1758, %v1779
        %v1801 = vmul.f32 %v1759, %v1783
        %v1802 = vmul.f32 %v1760, %v1783
        %v1803 = vmul.f32 %v1761, %v1783
        %v1804 = vmul.f32 %v1762, %v1787
        %v1805 = vmul.f32 %v1763, %v1787
        %v1806 = vmul.f32 %v1764, %v1787
        %1825 = vrot.lane.b32.xlu0 %v1789, 96
        %v1826 = vpop.permute.xlu0 %1825
        %1827 = vrot.lane.b32.xlu0 %v1790, 96
        %v1828 = vpop.permute.xlu0 %1827
        %1829 = vrot.lane.b32.xlu0 %v1791, 96
        %v1830 = vpop.permute.xlu0 %1829
        %1831 = vrot.lane.b32.xlu0 %v1792, 96
        %v1832 = vpop.permute.xlu0 %1831
        %1833 = vrot.lane.b32.xlu0 %v1793, 96
        %v1834 = vpop.permute.xlu0 %1833
        %1835 = vrot.lane.b32.xlu0 %v1794, 96
        %v1836 = vpop.permute.xlu0 %1835
        %1837 = vrot.lane.b32.xlu0 %v1795, 96
        %v1838 = vpop.permute.xlu0 %1837
        %1839 = vrot.lane.b32.xlu0 %v1796, 96
        %v1840 = vpop.permute.xlu0 %1839
        %1841 = vrot.lane.b32.xlu0 %v1797, 96
        %v1842 = vpop.permute.xlu0 %1841
        %1843 = vrot.lane.b32.xlu0 %v1798, 96
        %v1844 = vpop.permute.xlu0 %1843
        %1845 = vrot.lane.b32.xlu0 %v1799, 96
        %v1846 = vpop.permute.xlu0 %1845
        %1847 = vrot.lane.b32.xlu0 %v1800, 96
        %v1848 = vpop.permute.xlu0 %1847
        %1849 = vrot.lane.b32.xlu0 %v1801, 96
        %v1850 = vpop.permute.xlu0 %1849
        %1851 = vrot.lane.b32.xlu0 %v1802, 96
        %v1852 = vpop.permute.xlu0 %1851
        %1853 = vrot.lane.b32.xlu0 %v1803, 96
        %v1854 = vpop.permute.xlu0 %1853
        %1855 = vrot.lane.b32.xlu0 %v1804, 96
        %v1856 = vpop.permute.xlu0 %1855
        %1857 = vrot.lane.b32.xlu0 %v1805, 96
        %v1858 = vpop.permute.xlu0 %1857
        %1859 = vrot.lane.b32.xlu0 %v1806, 96
        %v1860 = vpop.permute.xlu0 %1859
        %vm1861 = vcmask 785408
        %v1862 = vsel %vm1861, %v1826, %v1828
        %v1863 = vsel %vm1861, %v1828, %v1830
        %v1864 = vsel %vm1861, %v1832, %v1834
        %v1865 = vsel %vm1861, %v1834, %v1836
        %v1866 = vsel %vm1861, %v1838, %v1840
        %v1867 = vsel %vm1861, %v1840, %v1842
        %v1868 = vsel %vm1861, %v1844, %v1846
        %v1869 = vsel %vm1861, %v1846, %v1848
        %v1870 = vsel %vm1861, %v1850, %v1852
        %v1871 = vsel %vm1861, %v1852, %v1854
        %v1872 = vsel %vm1861, %v1856, %v1858
        %v1873 = vsel %vm1861, %v1858, %v1860
        %v1892 = vadd.f32 %v1720, %v1862
        %v1893 = vadd.f32 %v1721, %v1863
        %v1894 = vadd.f32 %v1722, %v1830
        %v1895 = vadd.f32 %v1723, %v1864
        %v1896 = vadd.f32 %v1724, %v1865
        %v1897 = vadd.f32 %v1725, %v1836
        %v1898 = vadd.f32 %v1726, %v1866
        %v1899 = vadd.f32 %v1727, %v1867
        %v1900 = vadd.f32 %v1728, %v1842
        %v1901 = vadd.f32 %v1729, %v1868
        %v1902 = vadd.f32 %v1730, %v1869
        %v1903 = vadd.f32 %v1731, %v1848
        %v1904 = vadd.f32 %v1732, %v1870
        %v1905 = vadd.f32 %v1733, %v1871
        %v1906 = vadd.f32 %v1734, %v1854
        %v1907 = vadd.f32 %v1735, %v1872
        %v1908 = vadd.f32 %v1736, %v1873
        %v1909 = vadd.f32 %v1737, %v1860
        %1910 = vset.pattern.permute.xlu0 7
        %1911 = vperm.xlu0 %1910, %v849
        %v1912 = vpop.permute.xlu0 %1911
        %1914 = vset.pattern.permute.xlu0 7
        %1915 = vperm.xlu0 %1914, %v850
        %v1916 = vpop.permute.xlu0 %1915
        %1918 = vset.pattern.permute.xlu0 7
        %1919 = vperm.xlu0 %1918, %v851
        %v1920 = vpop.permute.xlu0 %1919
        %1922 = vset.pattern.permute.xlu0 7
        %1923 = vperm.xlu0 %1922, %v852
        %v1924 = vpop.permute.xlu0 %1923
        %1926 = vset.pattern.permute.xlu0 7
        %1927 = vperm.xlu0 %1926, %v853
        %v1928 = vpop.permute.xlu0 %1927
        %1930 = vset.pattern.permute.xlu0 7
        %1931 = vperm.xlu0 %1930, %v854
        %v1932 = vpop.permute.xlu0 %1931
        %v1934 = vmul.f32 %v800, %v1912
        %v1935 = vmul.f32 %v776, %v1912
        %v1936 = vmul.f32 %v806, %v1912
        %v1937 = vmul.f32 %v801, %v1916
        %v1938 = vmul.f32 %v777, %v1916
        %v1939 = vmul.f32 %v807, %v1916
        %v1940 = vmul.f32 %v802, %v1920
        %v1941 = vmul.f32 %v778, %v1920
        %v1942 = vmul.f32 %v808, %v1920
        %v1943 = vmul.f32 %v803, %v1924
        %v1944 = vmul.f32 %v779, %v1924
        %v1945 = vmul.f32 %v809, %v1924
        %v1946 = vmul.f32 %v804, %v1928
        %v1947 = vmul.f32 %v780, %v1928
        %v1948 = vmul.f32 %v810, %v1928
        %v1949 = vmul.f32 %v805, %v1932
        %v1950 = vmul.f32 %v781, %v1932
        %v1951 = vmul.f32 %v811, %v1932
        %1970 = vrot.lane.b32.xlu0 %v1934, 95
        %v1971 = vpop.permute.xlu0 %1970
        %1972 = vrot.lane.b32.xlu0 %v1935, 95
        %v1973 = vpop.permute.xlu0 %1972
        %1974 = vrot.lane.b32.xlu0 %v1936, 95
        %v1975 = vpop.permute.xlu0 %1974
        %1976 = vrot.lane.b32.xlu0 %v1937, 95
        %v1977 = vpop.permute.xlu0 %1976
        %1978 = vrot.lane.b32.xlu0 %v1938, 95
        %v1979 = vpop.permute.xlu0 %1978
        %1980 = vrot.lane.b32.xlu0 %v1939, 95
        %v1981 = vpop.permute.xlu0 %1980
        %1982 = vrot.lane.b32.xlu0 %v1940, 95
        %v1983 = vpop.permute.xlu0 %1982
        %1984 = vrot.lane.b32.xlu0 %v1941, 95
        %v1985 = vpop.permute.xlu0 %1984
        %1986 = vrot.lane.b32.xlu0 %v1942, 95
        %v1987 = vpop.permute.xlu0 %1986
        %1988 = vrot.lane.b32.xlu0 %v1943, 95
        %v1989 = vpop.permute.xlu0 %1988
        %1990 = vrot.lane.b32.xlu0 %v1944, 95
        %v1991 = vpop.permute.xlu0 %1990
        %1992 = vrot.lane.b32.xlu0 %v1945, 95
        %v1993 = vpop.permute.xlu0 %1992
        %1994 = vrot.lane.b32.xlu0 %v1946, 95
        %v1995 = vpop.permute.xlu0 %1994
        %1996 = vrot.lane.b32.xlu0 %v1947, 95
        %v1997 = vpop.permute.xlu0 %1996
        %1998 = vrot.lane.b32.xlu0 %v1948, 95
        %v1999 = vpop.permute.xlu0 %1998
        %2000 = vrot.lane.b32.xlu0 %v1949, 95
        %v2001 = vpop.permute.xlu0 %2000
        %2002 = vrot.lane.b32.xlu0 %v1950, 95
        %v2003 = vpop.permute.xlu0 %2002
        %2004 = vrot.lane.b32.xlu0 %v1951, 95
        %v2005 = vpop.permute.xlu0 %2004
        %vm2006 = vcmask 777216
        %v2007 = vsel %vm2006, %v1971, %v1973
        %v2008 = vsel %vm2006, %v1973, %v1975
        %v2009 = vsel %vm2006, %v1977, %v1979
        %v2010 = vsel %vm2006, %v1979, %v1981
        %v2011 = vsel %vm2006, %v1983, %v1985
        %v2012 = vsel %vm2006, %v1985, %v1987
        %v2013 = vsel %vm2006, %v1989, %v1991
        %v2014 = vsel %vm2006, %v1991, %v1993
        %v2015 = vsel %vm2006, %v1995, %v1997
        %v2016 = vsel %vm2006, %v1997, %v1999
        %v2017 = vsel %vm2006, %v2001, %v2003
        %v2018 = vsel %vm2006, %v2003, %v2005
        %v2037 = vadd.f32 %v1892, %v2007
        %v2038 = vadd.f32 %v1893, %v2008
        %v2039 = vadd.f32 %v1894, %v1975
        %v2040 = vadd.f32 %v1895, %v2009
        %v2041 = vadd.f32 %v1896, %v2010
        %v2042 = vadd.f32 %v1897, %v1981
        %v2043 = vadd.f32 %v1898, %v2011
        %v2044 = vadd.f32 %v1899, %v2012
        %v2045 = vadd.f32 %v1900, %v1987
        %v2046 = vadd.f32 %v1901, %v2013
        %v2047 = vadd.f32 %v1902, %v2014
        %v2048 = vadd.f32 %v1903, %v1993
        %v2049 = vadd.f32 %v1904, %v2015
        %v2050 = vadd.f32 %v1905, %v2016
        %v2051 = vadd.f32 %v1906, %v1999
        %v2052 = vadd.f32 %v1907, %v2017
        %v2053 = vadd.f32 %v1908, %v2018
        %v2054 = vadd.f32 %v1909, %v2005
        %2055 = vrot.lane.b32.xlu0 %v1072, 41
        %v2056 = vpop.permute.xlu0 %2055
        %2057 = vrot.lane.b32.xlu0 %v1076, 41
        %v2058 = vpop.permute.xlu0 %2057
        %vm2059 = vcmask 334848
        %v2060 = vsel %vm2059, %v2056, %v2058
        %v2064 = vmul.f32 %v800, %v2056
        %v2065 = vmul.f32 %v776, %v2060
        %v2066 = vmul.f32 %v806, %v2058
        %v2067 = vmul.f32 %v801, %v2056
        %v2068 = vmul.f32 %v777, %v2060
        %v2069 = vmul.f32 %v807, %v2058
        %v2070 = vmul.f32 %v802, %v2056
        %v2071 = vmul.f32 %v778, %v2060
        %v2072 = vmul.f32 %v808, %v2058
        %v2073 = vmul.f32 %v803, %v2056
        %v2074 = vmul.f32 %v779, %v2060
        %v2075 = vmul.f32 %v809, %v2058
        %v2076 = vmul.f32 %v804, %v2056
        %v2077 = vmul.f32 %v780, %v2060
        %v2078 = vmul.f32 %v810, %v2058
        %v2079 = vmul.f32 %v805, %v2056
        %v2080 = vmul.f32 %v781, %v2060
        %v2081 = vmul.f32 %v811, %v2058
        %2082 = vset.pattern.permute.xlu0 8
        %2083 = vperm.xlu0 %2082, %v849
        %v2084 = vpop.permute.xlu0 %2083
        %2086 = vset.pattern.permute.xlu0 8
        %2087 = vperm.xlu0 %2086, %v850
        %v2088 = vpop.permute.xlu0 %2087
        %2090 = vset.pattern.permute.xlu0 8
        %2091 = vperm.xlu0 %2090, %v851
        %v2092 = vpop.permute.xlu0 %2091
        %2094 = vset.pattern.permute.xlu0 8
        %2095 = vperm.xlu0 %2094, %v852
        %v2096 = vpop.permute.xlu0 %2095
        %2098 = vset.pattern.permute.xlu0 8
        %2099 = vperm.xlu0 %2098, %v853
        %v2100 = vpop.permute.xlu0 %2099
        %2102 = vset.pattern.permute.xlu0 8
        %2103 = vperm.xlu0 %2102, %v854
        %v2104 = vpop.permute.xlu0 %2103
        %v2106 = vmul.f32 %v2064, %v2084
        %v2107 = vmul.f32 %v2065, %v2084
        %v2108 = vmul.f32 %v2066, %v2084
        %v2109 = vmul.f32 %v2067, %v2088
        %v2110 = vmul.f32 %v2068, %v2088
        %v2111 = vmul.f32 %v2069, %v2088
        %v2112 = vmul.f32 %v2070, %v2092
        %v2113 = vmul.f32 %v2071, %v2092
        %v2114 = vmul.f32 %v2072, %v2092
        %v2115 = vmul.f32 %v2073, %v2096
        %v2116 = vmul.f32 %v2074, %v2096
        %v2117 = vmul.f32 %v2075, %v2096
        %v2118 = vmul.f32 %v2076, %v2100
        %v2119 = vmul.f32 %v2077, %v2100
        %v2120 = vmul.f32 %v2078, %v2100
        %v2121 = vmul.f32 %v2079, %v2104
        %v2122 = vmul.f32 %v2080, %v2104
        %v2123 = vmul.f32 %v2081, %v2104
        %2142 = vrot.lane.b32.xlu0 %v2106, 94
        %v2143 = vpop.permute.xlu0 %2142
        %2144 = vrot.lane.b32.xlu0 %v2107, 94
        %v2145 = vpop.permute.xlu0 %2144
        %2146 = vrot.lane.b32.xlu0 %v2108, 94
        %v2147 = vpop.permute.xlu0 %2146
        %2148 = vrot.lane.b32.xlu0 %v2109, 94
        %v2149 = vpop.permute.xlu0 %2148
        %2150 = vrot.lane.b32.xlu0 %v2110, 94
        %v2151 = vpop.permute.xlu0 %2150
        %2152 = vrot.lane.b32.xlu0 %v2111, 94
        %v2153 = vpop.permute.xlu0 %2152
        %2154 = vrot.lane.b32.xlu0 %v2112, 94
        %v2155 = vpop.permute.xlu0 %2154
        %2156 = vrot.lane.b32.xlu0 %v2113, 94
        %v2157 = vpop.permute.xlu0 %2156
        %2158 = vrot.lane.b32.xlu0 %v2114, 94
        %v2159 = vpop.permute.xlu0 %2158
        %2160 = vrot.lane.b32.xlu0 %v2115, 94
        %v2161 = vpop.permute.xlu0 %2160
        %2162 = vrot.lane.b32.xlu0 %v2116, 94
        %v2163 = vpop.permute.xlu0 %2162
        %2164 = vrot.lane.b32.xlu0 %v2117, 94
        %v2165 = vpop.permute.xlu0 %2164
        %2166 = vrot.lane.b32.xlu0 %v2118, 94
        %v2167 = vpop.permute.xlu0 %2166
        %2168 = vrot.lane.b32.xlu0 %v2119, 94
        %v2169 = vpop.permute.xlu0 %2168
        %2170 = vrot.lane.b32.xlu0 %v2120, 94
        %v2171 = vpop.permute.xlu0 %2170
        %2172 = vrot.lane.b32.xlu0 %v2121, 94
        %v2173 = vpop.permute.xlu0 %2172
        %2174 = vrot.lane.b32.xlu0 %v2122, 94
        %v2175 = vpop.permute.xlu0 %2174
        %2176 = vrot.lane.b32.xlu0 %v2123, 94
        %v2177 = vpop.permute.xlu0 %2176
        %vm2178 = vcmask 769024
        %v2179 = vsel %vm2178, %v2143, %v2145
        %v2180 = vsel %vm2178, %v2145, %v2147
        %v2181 = vsel %vm2178, %v2149, %v2151
        %v2182 = vsel %vm2178, %v2151, %v2153
        %v2183 = vsel %vm2178, %v2155, %v2157
        %v2184 = vsel %vm2178, %v2157, %v2159
        %v2185 = vsel %vm2178, %v2161, %v2163
        %v2186 = vsel %vm2178, %v2163, %v2165
        %v2187 = vsel %vm2178, %v2167, %v2169
        %v2188 = vsel %vm2178, %v2169, %v2171
        %v2189 = vsel %vm2178, %v2173, %v2175
        %v2190 = vsel %vm2178, %v2175, %v2177
        %v2209 = vadd.f32 %v2037, %v2179
        %v2210 = vadd.f32 %v2038, %v2180
        %v2211 = vadd.f32 %v2039, %v2147
        %v2212 = vadd.f32 %v2040, %v2181
        %v2213 = vadd.f32 %v2041, %v2182
        %v2214 = vadd.f32 %v2042, %v2153
        %v2215 = vadd.f32 %v2043, %v2183
        %v2216 = vadd.f32 %v2044, %v2184
        %v2217 = vadd.f32 %v2045, %v2159
        %v2218 = vadd.f32 %v2046, %v2185
        %v2219 = vadd.f32 %v2047, %v2186
        %v2220 = vadd.f32 %v2048, %v2165
        %v2221 = vadd.f32 %v2049, %v2187
        %v2222 = vadd.f32 %v2050, %v2188
        %v2223 = vadd.f32 %v2051, %v2171
        %v2224 = vadd.f32 %v2052, %v2189
        %v2225 = vadd.f32 %v2053, %v2190
        %v2226 = vadd.f32 %v2054, %v2177
        %v2227 = vld [vmem:[%s6] sm:$0xff]
        %v2228 = vld [vmem:[%s6 + $0x8] sm:$0xff]
        %v2229 = vld [vmem:[%s6 + $0x10] sm:$0xff]
        %v2230 = vld [vmem:[%s6 + $0x18] sm:$0xff]
        %v2231 = vld [vmem:[%s6 + $0x20] sm:$0xff]
        %v2232 = vld [vmem:[%s6 + $0x28] sm:$0xff]
        %2234 = vset.pattern.permute.xlu0 0
        %2235 = vperm.xlu0 %2234, %v2227
        %v2236 = vpop.permute.xlu0 %2235
        %2239 = vset.pattern.permute.xlu0 0
        %2240 = vperm.xlu0 %2239, %v2228
        %v2241 = vpop.permute.xlu0 %2240
        %2244 = vset.pattern.permute.xlu0 0
        %2245 = vperm.xlu0 %2244, %v2229
        %v2246 = vpop.permute.xlu0 %2245
        %2249 = vset.pattern.permute.xlu0 0
        %2250 = vperm.xlu0 %2249, %v2230
        %v2251 = vpop.permute.xlu0 %2250
        %2254 = vset.pattern.permute.xlu0 0
        %2255 = vperm.xlu0 %2254, %v2231
        %v2256 = vpop.permute.xlu0 %2255
        %2259 = vset.pattern.permute.xlu0 0
        %2260 = vperm.xlu0 %2259, %v2232
        %v2261 = vpop.permute.xlu0 %2260
        %v2263 = vadd.f32 %v2209, %v2236
        %v2264 = vadd.f32 %v2210, %v2236
        %v2265 = vadd.f32 %v2211, %v2236
        %v2266 = vadd.f32 %v2212, %v2241
        %v2267 = vadd.f32 %v2213, %v2241
        %v2268 = vadd.f32 %v2214, %v2241
        %v2269 = vadd.f32 %v2215, %v2246
        %v2270 = vadd.f32 %v2216, %v2246
        %v2271 = vadd.f32 %v2217, %v2246
        %v2272 = vadd.f32 %v2218, %v2251
        %v2273 = vadd.f32 %v2219, %v2251
        %v2274 = vadd.f32 %v2220, %v2251
        %v2275 = vadd.f32 %v2221, %v2256
        %v2276 = vadd.f32 %v2222, %v2256
        %v2277 = vadd.f32 %v2223, %v2256
        %v2278 = vadd.f32 %v2224, %v2261
        %v2279 = vadd.f32 %v2225, %v2261
        %v2280 = vadd.f32 %v2226, %v2261
        %v2281 = vmul.f32 %v2263, %v2263
        %v2282 = vmul.f32 %v2264, %v2264
        %v2283 = vmul.f32 %v2265, %v2265
        %v2284 = vmul.f32 %v2266, %v2266
        %v2285 = vmul.f32 %v2267, %v2267
        %v2286 = vmul.f32 %v2268, %v2268
        %2293 = vrot.lane.b32.xlu0 %v2281, 121
        %v2294 = vpop.permute.xlu0 %2293
        %2295 = vrot.lane.b32.xlu0 %v2282, 121
        %v2296 = vpop.permute.xlu0 %2295
        %2297 = vrot.lane.b32.xlu0 %v2283, 121
        %v2298 = vpop.permute.xlu0 %2297
        %2299 = vrot.lane.b32.xlu0 %v2284, 121
        %v2300 = vpop.permute.xlu0 %2299
        %2301 = vrot.lane.b32.xlu0 %v2285, 121
        %v2302 = vpop.permute.xlu0 %2301
        %2303 = vrot.lane.b32.xlu0 %v2286, 121
        %v2304 = vpop.permute.xlu0 %2303
        %vm2305 = vcmask 990208
        %v2306 = vsel %vm2305, %v2294, %v2296
        %v2307 = vsel %vm2305, %v2296, %v2298
        %v2308 = vsel %vm2305, %v2300, %v2302
        %v2309 = vsel %vm2305, %v2302, %v2304
        %v2314 = vadd.f32 %v2306, %v2307
        %2315 = vadd.xlane.f32.xlu0 %v2314
        %v2316 = vpop.xlane.xlu0 %2315
        %v2317 = vadd.f32 %v2308, %v2309
        %2318 = vadd.xlane.f32.xlu0 %v2317
        %v2319 = vpop.xlane.xlu0 %2318
        %v2320 = vmax.f32 %v2316, 1e-24
        %v2321 = vmax.f32 %v2319, 1e-24
        %v2322 = vrsqrt.pop %v2320
        %v2323 = vrsqrt.pop %v2321
        %v2324 = vmul.f32 %v2263, %v2322
        %v2325 = vmul.f32 %v2264, %v2322
        %v2326 = vmul.f32 %v2265, %v2322
        %v2327 = vmul.f32 %v2266, %v2323
        %v2328 = vmul.f32 %v2267, %v2323
        %v2329 = vmul.f32 %v2268, %v2323
        %v2330 = vmul.f32 %v2269, %v2269
        %v2331 = vmul.f32 %v2270, %v2270
        %v2332 = vmul.f32 %v2271, %v2271
        %v2333 = vmul.f32 %v2272, %v2272
        %v2334 = vmul.f32 %v2273, %v2273
        %v2335 = vmul.f32 %v2274, %v2274
        %2342 = vrot.lane.b32.xlu0 %v2330, 121
        %v2343 = vpop.permute.xlu0 %2342
        %2344 = vrot.lane.b32.xlu0 %v2331, 121
        %v2345 = vpop.permute.xlu0 %2344
        %2346 = vrot.lane.b32.xlu0 %v2332, 121
        %v2347 = vpop.permute.xlu0 %2346
        %2348 = vrot.lane.b32.xlu0 %v2333, 121
        %v2349 = vpop.permute.xlu0 %2348
        %2350 = vrot.lane.b32.xlu0 %v2334, 121
        %v2351 = vpop.permute.xlu0 %2350
        %2352 = vrot.lane.b32.xlu0 %v2335, 121
        %v2353 = vpop.permute.xlu0 %2352
        %v2354 = vsel %vm2305, %v2343, %v2345
        %v2355 = vsel %vm2305, %v2345, %v2347
        %v2356 = vsel %vm2305, %v2349, %v2351
        %v2357 = vsel %vm2305, %v2351, %v2353
        %v2362 = vadd.f32 %v2354, %v2355
        %2363 = vadd.xlane.f32.xlu0 %v2362
        %v2364 = vpop.xlane.xlu0 %2363
        %v2365 = vadd.f32 %v2356, %v2357
        %2366 = vadd.xlane.f32.xlu0 %v2365
        %v2367 = vpop.xlane.xlu0 %2366
        %v2368 = vmax.f32 %v2364, 1e-24
        %v2369 = vmax.f32 %v2367, 1e-24
        %v2370 = vrsqrt.pop %v2368
        %v2371 = vrsqrt.pop %v2369
        %v2372 = vmul.f32 %v2269, %v2370
        %v2373 = vmul.f32 %v2270, %v2370
        %v2374 = vmul.f32 %v2271, %v2370
        %v2375 = vmul.f32 %v2272, %v2371
        %v2376 = vmul.f32 %v2273, %v2371
        %v2377 = vmul.f32 %v2274, %v2371
        %2384 = vrot.lane.b32.xlu0 %v2324, 121
        %v2385 = vpop.permute.xlu0 %2384
        %2386 = vrot.lane.b32.xlu0 %v2325, 121
        %v2387 = vpop.permute.xlu0 %2386
        %2388 = vrot.lane.b32.xlu0 %v2326, 121
        %v2389 = vpop.permute.xlu0 %2388
        %2390 = vrot.lane.b32.xlu0 %v2327, 121
        %v2391 = vpop.permute.xlu0 %2390
        %2392 = vrot.lane.b32.xlu0 %v2328, 121
        %v2393 = vpop.permute.xlu0 %2392
        %2394 = vrot.lane.b32.xlu0 %v2329, 121
        %v2395 = vpop.permute.xlu0 %2394
        %v2396 = vsel %vm2305, %v2385, %v2387
        %v2397 = vsel %vm2305, %v2387, %v2389
        %v2398 = vsel %vm2305, %v2391, %v2393
        %v2399 = vsel %vm2305, %v2393, %v2395
        %2410 = vrot.lane.b32.xlu0 %v2372, 121
        %v2411 = vpop.permute.xlu0 %2410
        %2412 = vrot.lane.b32.xlu0 %v2373, 121
        %v2413 = vpop.permute.xlu0 %2412
        %2414 = vrot.lane.b32.xlu0 %v2374, 121
        %v2415 = vpop.permute.xlu0 %2414
        %2416 = vrot.lane.b32.xlu0 %v2375, 121
        %v2417 = vpop.permute.xlu0 %2416
        %2418 = vrot.lane.b32.xlu0 %v2376, 121
        %v2419 = vpop.permute.xlu0 %2418
        %2420 = vrot.lane.b32.xlu0 %v2377, 121
        %v2421 = vpop.permute.xlu0 %2420
        %v2422 = vsel %vm2305, %v2411, %v2413
        %v2423 = vsel %vm2305, %v2413, %v2415
        %v2424 = vsel %vm2305, %v2417, %v2419
        %v2425 = vsel %vm2305, %v2419, %v2421
        %2430 = vmatprep.subr.mxu0 %v2423
        %2431 = vmatpush1.xpose.msra.mxu0 %v2422
        %2432 = vmatprep.subr.mxu0 %v2425
        %2433 = vmatpush1.xpose.msra.mxu0 %v2424
        %2434 = vmatprep.subr.mxu0 0.0
        %2435 = vmatpush1.xpose.msra.mxu0 0.0
        %2436 = vmatprep.subr.mxu0 0.0
        %2437 = vmatpush1.xpose.msra.mxu0 0.0
        %2438 = vmatprep.subr.mxu0 0.0
        %2439 = vmatpush1.xpose.msra.mxu0 0.0
        %2440 = vmatprep.subr.mxu0 0.0
        %2441 = vmatpush1.xpose.msra.mxu0 0.0
        %2442 = vmatprep.subr.mxu0 0.0
        %2443 = vmatpush1.xpose.msra.mxu0 0.0
        %2444 = vmatprep.subr.mxu0 0.0
        %2445 = vmatpush1.xpose.msra.mxu0 0.0
        %2446 = vmatprep.subr.mxu0 0.0
        %2447 = vmatpush1.xpose.msra.mxu0 0.0
        %2448 = vmatprep.subr.mxu0 0.0
        %2449 = vmatpush1.xpose.msra.mxu0 0.0
        %2450 = vmatprep.subr.mxu0 0.0
        %2451 = vmatpush1.xpose.msra.mxu0 0.0
        %2452 = vmatprep.subr.mxu0 0.0
        %2453 = vmatpush1.xpose.msra.mxu0 0.0
        %2454 = vmatprep.subr.mxu0 0.0
        %2455 = vmatpush1.xpose.msra.mxu0 0.0
        %2456 = vmatprep.subr.mxu0 0.0
        %2457 = vmatpush1.xpose.msra.mxu0 0.0
        %2458 = vmatprep.subr.mxu0 0.0
        %2459 = vmatpush1.xpose.msra.mxu0 0.0
        %2460 = vmatprep.subr.mxu0 0.0
        %2461 = vmatpush1.xpose.msra.mxu0 0.0
        %2462 = vmatprep.subr.mxu0 0.0
        %2463 = vmatpush1.xpose.msra.mxu0 0.0
        %2464 = vmatprep.subr.mxu0 0.0
        %2465 = vmatpush1.xpose.msra.mxu0 0.0
        %2466 = vmatprep.subr.mxu0 0.0
        %2467 = vmatpush1.xpose.msra.mxu0 0.0
        %2468 = vmatprep.subr.mxu0 0.0
        %2469 = vmatpush1.xpose.msra.mxu0 0.0
        %2470 = vmatprep.subr.mxu0 0.0
        %2471 = vmatpush1.xpose.msra.mxu0 0.0
        %2472 = vmatprep.subr.mxu0 0.0
        %2473 = vmatpush1.xpose.msra.mxu0 0.0
        %2474 = vmatprep.subr.mxu0 0.0
        %2475 = vmatpush1.xpose.msra.mxu0 0.0
        %2476 = vmatprep.subr.mxu0 0.0
        %2477 = vmatpush1.xpose.msra.mxu0 0.0
        %2478 = vmatprep.subr.mxu0 0.0
        %2479 = vmatpush1.xpose.msra.mxu0 0.0
        %2480 = vmatprep.subr.mxu0 0.0
        %2481 = vmatpush1.xpose.msra.mxu0 0.0
        %2482 = vmatprep.subr.mxu0 0.0
        %2483 = vmatpush1.xpose.msra.mxu0 0.0
        %2484 = vmatprep.subr.mxu0 0.0
        %2485 = vmatpush1.xpose.msra.mxu0 0.0
        %2486 = vmatprep.subr.mxu0 0.0
        %2487 = vmatpush1.xpose.msra.mxu0 0.0
        %2488 = vmatprep.subr.mxu0 0.0
        %2489 = vmatpush1.xpose.msra.mxu0 0.0
        %2490 = vmatprep.subr.mxu0 0.0
        %2491 = vmatpush1.xpose.msra.mxu0 0.0
        %2492 = vmatprep.subr.mxu0 0.0
        %2493 = vmatpush1.xpose.msra.mxu0 0.0
        %2494 = vmatprep.mubr.f32.mxu0 %v2397
        %2495 = vmatmul.mubr.f32.gmra.mrb[0].mxu0 %v2396
        %v2496 = vpop.f32.mrb[0].mxu0
        %v2497 = vadd.f32 0.0, %v2496
        %v2498 = vpop.f32.mrb[0].mxu0
        %2499 = vmatprep.mubr.f32.mxu0 %v2399
        %2500 = vmatmul.mubr.f32.gmra.mrb[0].mxu0 %v2398
        %v2501 = vpop.f32.mrb[0].mxu0
        %v2502 = vadd.f32 0.0, %v2501
        %v2503 = vpop.f32.mrb[0].mxu0
        %2504 = vdwg.mxu0
        %v2505 = vld [vmem:[%s8] sm:$0xff]
        %v2506 = vld [vmem:[%s8 + $0x8] sm:$0xff]
        %2508 = vset.pattern.permute.xlu0 0
        %2509 = vperm.xlu0 %2508, %v2505
        %v2510 = vpop.permute.xlu0 %2509
        %2513 = vset.pattern.permute.xlu0 0
        %2514 = vperm.xlu0 %2513, %v2506
        %v2515 = vpop.permute.xlu0 %2514
        %v2517 = vmul.f32 %v2497, %v2510
        %v2518 = vmul.f32 %v2502, %v2515
        %v2519 = vld [vmem:[%s9] sm:$0xff]
        %v2520 = vld [vmem:[%s9 + $0x8] sm:$0xff]
        %v2521 = vadd.f32 %v2517, %v2519
        %v2522 = vadd.f32 %v2518, %v2520
        %v2523 = vsel %vm452, %v2521, -inf
        %2524 = vmax.xlane.f32.xlu0 %v2523
        %v2525 = vpop.xlane.xlu0 %2524
        %v2526 = vsel %vm452, %v2522, -inf
        %2527 = vmax.xlane.f32.xlu0 %v2526
        %v2528 = vpop.xlane.xlu0 %2527
        %v2529 = vsub.f32 %v2521, %v2525
        %v2530 = vsub.f32 %v2522, %v2528
        %v2531 = vmul.f32 %v2529, 1.442695
        %v2532 = vpow.pop %v2531
        %v2533 = vmul.f32 %v2530, 1.442695
        %v2534 = vpow.pop %v2533
        %v2535 = vsel %vm452, %v2532, 0.0
        %2536 = vadd.xlane.f32.xlu0 %v2535
        %v2537 = vpop.xlane.xlu0 %2536
        %v2538 = vsel %vm452, %v2534, 0.0
        %2539 = vadd.xlane.f32.xlu0 %v2538
        %v2540 = vpop.xlane.xlu0 %2539
        %v2541 = vrcp.pop %v2537
        %v2542 = vmul.f32 %v2532, %v2541
        %v2543 = vrcp.pop %v2540
        %v2544 = vmul.f32 %v2534, %v2543
        %2551 = vrot.lane.b32.xlu0 %v2275, 121
        %v2552 = vpop.permute.xlu0 %2551
        %2553 = vrot.lane.b32.xlu0 %v2276, 121
        %v2554 = vpop.permute.xlu0 %2553
        %2555 = vrot.lane.b32.xlu0 %v2277, 121
        %v2556 = vpop.permute.xlu0 %2555
        %2557 = vrot.lane.b32.xlu0 %v2278, 121
        %v2558 = vpop.permute.xlu0 %2557
        %2559 = vrot.lane.b32.xlu0 %v2279, 121
        %v2560 = vpop.permute.xlu0 %2559
        %2561 = vrot.lane.b32.xlu0 %v2280, 121
        %v2562 = vpop.permute.xlu0 %2561
        %v2563 = vsel %vm2305, %v2552, %v2554
        %v2564 = vsel %vm2305, %v2554, %v2556
        %v2565 = vsel %vm2305, %v2558, %v2560
        %v2566 = vsel %vm2305, %v2560, %v2562
        %v2572 = vsel %vm452, %v2542, 0
        %v2575 = vsel %vm452, %v2544, 0
        %2577 = vmatprep.subr.mxu0 %v2564
        %2578 = vmatpush1.msra.mxu0 %v2563
        %2579 = vmatprep.subr.mxu0 %v2566
        %2580 = vmatpush1.msra.mxu0 %v2565
        %2581 = vmatprep.subr.mxu0 0.0
        %2582 = vmatpush1.msra.mxu0 0.0
        %2583 = vmatprep.subr.mxu0 0.0
        %2584 = vmatpush1.msra.mxu0 0.0
        %2585 = vmatprep.subr.mxu0 0.0
        %2586 = vmatpush1.msra.mxu0 0.0
        %2587 = vmatprep.subr.mxu0 0.0
        %2588 = vmatpush1.msra.mxu0 0.0
        %2589 = vmatprep.subr.mxu0 0.0
        %2590 = vmatpush1.msra.mxu0 0.0
        %2591 = vmatprep.subr.mxu0 0.0
        %2592 = vmatpush1.msra.mxu0 0.0
        %2593 = vmatprep.subr.mxu0 0.0
        %2594 = vmatpush1.msra.mxu0 0.0
        %2595 = vmatprep.subr.mxu0 0.0
        %2596 = vmatpush1.msra.mxu0 0.0
        %2597 = vmatprep.subr.mxu0 0.0
        %2598 = vmatpush1.msra.mxu0 0.0
        %2599 = vmatprep.subr.mxu0 0.0
        %2600 = vmatpush1.msra.mxu0 0.0
        %2601 = vmatprep.subr.mxu0 0.0
        %2602 = vmatpush1.msra.mxu0 0.0
        %2603 = vmatprep.subr.mxu0 0.0
        %2604 = vmatpush1.msra.mxu0 0.0
        %2605 = vmatprep.subr.mxu0 0.0
        %2606 = vmatpush1.msra.mxu0 0.0
        %2607 = vmatprep.subr.mxu0 0.0
        %2608 = vmatpush1.msra.mxu0 0.0
        %2609 = vmatprep.subr.mxu0 0.0
        %2610 = vmatpush1.msra.mxu0 0.0
        %2611 = vmatprep.subr.mxu0 0.0
        %2612 = vmatpush1.msra.mxu0 0.0
        %2613 = vmatprep.subr.mxu0 0.0
        %2614 = vmatpush1.msra.mxu0 0.0
        %2615 = vmatprep.subr.mxu0 0.0
        %2616 = vmatpush1.msra.mxu0 0.0
        %2617 = vmatprep.subr.mxu0 0.0
        %2618 = vmatpush1.msra.mxu0 0.0
        %2619 = vmatprep.subr.mxu0 0.0
        %2620 = vmatpush1.msra.mxu0 0.0
        %2621 = vmatprep.subr.mxu0 0.0
        %2622 = vmatpush1.msra.mxu0 0.0
        %2623 = vmatprep.subr.mxu0 0.0
        %2624 = vmatpush1.msra.mxu0 0.0
        %2625 = vmatprep.subr.mxu0 0.0
        %2626 = vmatpush1.msra.mxu0 0.0
        %2627 = vmatprep.subr.mxu0 0.0
        %2628 = vmatpush1.msra.mxu0 0.0
        %2629 = vmatprep.subr.mxu0 0.0
        %2630 = vmatpush1.msra.mxu0 0.0
        %2631 = vmatprep.subr.mxu0 0.0
        %2632 = vmatpush1.msra.mxu0 0.0
        %2633 = vmatprep.subr.mxu0 0.0
        %2634 = vmatpush1.msra.mxu0 0.0
        %2635 = vmatprep.subr.mxu0 0.0
        %2636 = vmatpush1.msra.mxu0 0.0
        %2637 = vmatprep.subr.mxu0 0.0
        %2638 = vmatpush1.msra.mxu0 0.0
        %2639 = vmatprep.subr.mxu0 0.0
        %2640 = vmatpush1.msra.mxu0 0.0
        %2641 = vmatprep.mubr.f32.mxu0 0.0
        %2642 = vmatmul.mubr.f32.gmra.mrb[0].mxu0 %v2572
        %v2643 = vpop.f32.mrb[0].mxu0
        %v2644 = vadd.f32 0.0, %v2643
        %v2645 = vpop.f32.mrb[0].mxu0
        %v2646 = vadd.f32 0.0, %v2645
        %2647 = vmatprep.mubr.f32.mxu0 0.0
        %2648 = vmatmul.mubr.f32.gmra.mrb[0].mxu0 %v2575
        %v2649 = vpop.f32.mrb[0].mxu0
        %v2650 = vadd.f32 0.0, %v2649
        %v2651 = vpop.f32.mrb[0].mxu0
        %v2652 = vadd.f32 0.0, %v2651
        %2653 = vdwg.mxu0
        %v2654 = vld [vmem:[%s10] sm:$0xff]
        %v2655 = vld [vmem:[%s10 + $0x8] sm:$0xff]
        %v2656 = vld [vmem:[%s11] sm:$0xff]
        %v2657 = vld [vmem:[%s11 + $0x8] sm:$0xff]
        %2659 = vset.pattern.permute.xlu0 0
        %2660 = vperm.xlu0 %2659, %v2656
        %v2661 = vpop.permute.xlu0 %2660
        %2664 = vset.pattern.permute.xlu0 0
        %2665 = vperm.xlu0 %2664, %v2657
        %v2666 = vpop.permute.xlu0 %2665
        %v2669 = vsel %vm452, %v2654, 0
        %v2672 = vsel %vm452, %v2655, 0
        %2674 = vmatprep.subr.mxu0 %v2646
        %2675 = vmatpush1.msra.mxu0 %v2644
        %2676 = vmatprep.subr.mxu0 %v2652
        %2677 = vmatpush1.msra.mxu0 %v2650
        %2678 = vmatprep.subr.mxu0 0.0
        %2679 = vmatpush1.msra.mxu0 0.0
        %2680 = vmatprep.subr.mxu0 0.0
        %2681 = vmatpush1.msra.mxu0 0.0
        %2682 = vmatprep.subr.mxu0 0.0
        %2683 = vmatpush1.msra.mxu0 0.0
        %2684 = vmatprep.subr.mxu0 0.0
        %2685 = vmatpush1.msra.mxu0 0.0
        %2686 = vmatprep.subr.mxu0 0.0
        %2687 = vmatpush1.msra.mxu0 0.0
        %2688 = vmatprep.subr.mxu0 0.0
        %2689 = vmatpush1.msra.mxu0 0.0
        %2690 = vmatprep.subr.mxu0 0.0
        %2691 = vmatpush1.msra.mxu0 0.0
        %2692 = vmatprep.subr.mxu0 0.0
        %2693 = vmatpush1.msra.mxu0 0.0
        %2694 = vmatprep.subr.mxu0 0.0
        %2695 = vmatpush1.msra.mxu0 0.0
        %2696 = vmatprep.subr.mxu0 0.0
        %2697 = vmatpush1.msra.mxu0 0.0
        %2698 = vmatprep.subr.mxu0 0.0
        %2699 = vmatpush1.msra.mxu0 0.0
        %2700 = vmatprep.subr.mxu0 0.0
        %2701 = vmatpush1.msra.mxu0 0.0
        %2702 = vmatprep.subr.mxu0 0.0
        %2703 = vmatpush1.msra.mxu0 0.0
        %2704 = vmatprep.subr.mxu0 0.0
        %2705 = vmatpush1.msra.mxu0 0.0
        %2706 = vmatprep.subr.mxu0 0.0
        %2707 = vmatpush1.msra.mxu0 0.0
        %2708 = vmatprep.subr.mxu0 0.0
        %2709 = vmatpush1.msra.mxu0 0.0
        %2710 = vmatprep.subr.mxu0 0.0
        %2711 = vmatpush1.msra.mxu0 0.0
        %2712 = vmatprep.subr.mxu0 0.0
        %2713 = vmatpush1.msra.mxu0 0.0
        %2714 = vmatprep.subr.mxu0 0.0
        %2715 = vmatpush1.msra.mxu0 0.0
        %2716 = vmatprep.subr.mxu0 0.0
        %2717 = vmatpush1.msra.mxu0 0.0
        %2718 = vmatprep.subr.mxu0 0.0
        %2719 = vmatpush1.msra.mxu0 0.0
        %2720 = vmatprep.subr.mxu0 0.0
        %2721 = vmatpush1.msra.mxu0 0.0
        %2722 = vmatprep.subr.mxu0 0.0
        %2723 = vmatpush1.msra.mxu0 0.0
        %2724 = vmatprep.subr.mxu0 0.0
        %2725 = vmatpush1.msra.mxu0 0.0
        %2726 = vmatprep.subr.mxu0 0.0
        %2727 = vmatpush1.msra.mxu0 0.0
        %2728 = vmatprep.subr.mxu0 0.0
        %2729 = vmatpush1.msra.mxu0 0.0
        %2730 = vmatprep.subr.mxu0 0.0
        %2731 = vmatpush1.msra.mxu0 0.0
        %2732 = vmatprep.subr.mxu0 0.0
        %2733 = vmatpush1.msra.mxu0 0.0
        %2734 = vmatprep.subr.mxu0 0.0
        %2735 = vmatpush1.msra.mxu0 0.0
        %2736 = vmatprep.subr.mxu0 0.0
        %2737 = vmatpush1.msra.mxu0 0.0
        %2738 = vmatprep.mubr.f32.mxu0 0.0
        %2739 = vmatmul.mubr.f32.gmra.mrb[0].mxu0 %v2669
        %v2740 = vpop.f32.mrb[0].mxu0
        %v2741 = vadd.f32 %v2661, %v2740
        %v2742 = vpop.f32.mrb[0].mxu0
        %v2743 = vadd.f32 %v2661, %v2742
        %2744 = vmatprep.mubr.f32.mxu0 0.0
        %2745 = vmatmul.mubr.f32.gmra.mrb[0].mxu0 %v2672
        %v2746 = vpop.f32.mrb[0].mxu0
        %v2747 = vadd.f32 %v2666, %v2746
        %v2748 = vpop.f32.mrb[0].mxu0
        %v2749 = vadd.f32 %v2666, %v2748
        %2750 = vdwg.mxu0
        %2751 = vst [vmem:[%s421] sm:$0xff] %v2741
        %2752 = vst [vmem:[%s421 + $0x8] sm:$0xff] %v2743
        %2753 = vst [vmem:[%s421 + $0x10] sm:$0xff] %v2747
        %2754 = vst [vmem:[%s421 + $0x18] sm:$0xff] %v2749
        %s2755 = sand.u32 %s296, 1
        %s2756 = scalar_lea.sflag [#allocation3], %s2755
        %s2757 = sand.u32 %s296, 1
        %s2758 = smul.addr %s2757, 32
        %s2759 = scalar_lea.vmem [#allocation2], %s2758
        // Predicated region
        $region69: #{tpu_custom_call.1} parent=67 // pred_check
          %p2760 = pneg %p306
        $region70: #{tpu_custom_call.1} parent=67 // pred_check_branch
          %2762 = sbr.rel (%p2760) target = $region72
        $region71: #{tpu_custom_call.1} parent=67 // pred_region
          %s2764 = ssub.s32 512, 512
          %2765 = vsyncadd %s2756, %s2764
          %s2766 = smul.addr %s26, 4
          %s2767 = smul.addr %s2766, 128
          %s2768 = scalar_lea.hbm %s12, %s2767
          %s2769 = sshll.u32 %s2759, 4
          %s2770 = int_to_ptr.vmem [resolvable:$true] %s2769
          %2775 = dma.vmem_to_hbm [thread:$0]  %s2770, 512, %s2768, %s2756, 256, 256, 16
        $region72: #{tpu_custom_call.1} parent=67 // pred_fallthru
          _
      $region68: #{tpu_custom_call.1} parent=5 // pred_fallthru
        _
      %p2776 = scmp.le.s32.totalorder 2, %s21
      // Predicated region
      $region73: #{tpu_custom_call.1} parent=5 // pred_check
        %p2777 = pneg %p2776
      $region74: #{tpu_custom_call.1} parent=5 // pred_check_branch
        %2779 = sbr.rel (%p2777) target = $region76
      $region75: #{tpu_custom_call.1} parent=5 // pred_region
        %s2780 = ssub.s32 %s21, 2
        // Predicated region
        $region77: #{tpu_custom_call.1} parent=75 // pred_check
          %p2781 = pneg %p312
        $region78: #{tpu_custom_call.1} parent=75 // pred_check_branch
          %2783 = sbr.rel (%p2781) target = $region80
        $region79: #{tpu_custom_call.1} parent=75 // pred_region
          %s2784 = sand.u32 %s297, 1
          %s2785 = scalar_lea.sflag [#allocation3], %s2784
          %s2786 = sand.u32 %s297, 1
          %s2787 = smul.addr %s2786, 32
          %s2788 = scalar_lea.vmem [#allocation2], %s2787
          %2789 = dma.done %s2785, 512
        $region80: #{tpu_custom_call.1} parent=75 // pred_fallthru
          _
      $region76: #{tpu_custom_call.1} parent=5 // pred_fallthru
        _
    $region6: #{tpu_custom_call.1} parent=1 // loop_footer
      %s25 = sadd.s32 1, %s21
    $region7: #{tpu_custom_call.1} parent=1 // loop_footer_branch
      %20 = sbr.rel target = $region3
    $region8: #{tpu_custom_call.1} parent=1 // loop_exit
      _
    %2790 = vsyncpa [#allocation3], 1
    %s2791 = scalar_lea.sflag [#allocation3], 1
    %2792 = vsyncpa %s2791, 1

</llo_original>
